<compile_context>
chip_gen: v6e
topology: v6e:2x2x1
jax: 0.10.0
libtpu: 0.0.40
codegen_flags: <defaults>
</compile_context>

<pallas_src>
import functools

import jax
import jax.numpy as jnp
from jax.experimental import pallas as pl
from jax.experimental.pallas import tpu as pltpu


def _ru(x, m=128):
    return (x + m - 1) // m * m


# Fixed ordering of prepared parameter arrays (matches kernel signature).
_PARAM_ORDER = (
    "wt1", "bt1", "wt2", "bt2",
    "wp1", "bp1", "wp2", "bp2",
    "ws1", "bs1", "ws2", "bs2",
    "wf_t", "wf_p", "wf_s", "bf",
    "wdf_t", "bdf_t", "wdf_p", "bdf_p", "wdf_s", "bdf_s",
    "wdt1", "bdt1", "wdt2", "bdt2",
    "wdp1", "bdp1", "wdp2", "bdp2",
    "wds1", "bds1", "wds2", "bds2",
)


def _padded_dims(dims):
    (Dt, Dt1, Dt2, Dp, Dp1, Dp2, Ds, Ds1, Ds2, Z) = dims
    return dict(
        T1p=_ru(Dt1), T2p=_ru(Dt2),
        P1p=_ru(Dp1), P2p=_ru(Dp2),
        S1p=_ru(Ds1), S2p=_ru(Ds2),
        Zp=_ru(Z), Tout=_ru(Dt), Pout=_ru(Dp), Sout=_ru(Ds),
    )


# ----------------------------------------------------------------------------
# Fused Pallas kernel: whole autoencoder forward, one batch tile per grid step
# ----------------------------------------------------------------------------
def _autoencoder_kernel(
    # batch-tiled activations
    xt_ref, xp_ref, xs_ref,
    # encoder text / ppi / seq
    wt1, bt1, wt2, bt2,
    wp1, bp1, wp2, bp2,
    ws1, bs1, ws2, bs2,
    # encoder fuse (row-split), decoder fuse (column-split)
    wf_t, wf_p, wf_s, bf,
    wdf_t, bdf_t, wdf_p, bdf_p, wdf_s, bdf_s,
    # modality decoders
    wdt1, bdt1, wdt2, bdt2,
    wdp1, bdp1, wdp2, bdp2,
    wds1, bds1, wds2, bds2,
    # lane-dense output slab (TM, Tout + Pout + Sout + Zp)
    o_ref,
    *, off_t, off_p, off_s, off_z, w_t, w_p, w_s, w_z):
    f32 = jnp.float32

    def lt(x, w_ref, b_ref):
        # Cast the activation to the weight dtype (bf16 when enabled) so the
        # MXU sees native operands; accumulate + bias + tanh in f32.
        w = w_ref[...]
        y = jnp.dot(x.astype(w.dtype), w, preferred_element_type=f32)
        return jnp.tanh(y + b_ref[...].astype(f32))

    # --- encoders (intermediates stay in vregs/VMEM) ---
    et = lt(lt(xt_ref[...], wt1, bt1), wt2, bt2)   # (TM, T2p)
    ep = lt(lt(xp_ref[...], wp1, bp1), wp2, bp2)   # (TM, P2p)
    es = lt(lt(xs_ref[...], ws1, bs1), ws2, bs2)   # (TM, S2p)

    # --- fuse encoder: concat(et,ep,es) @ Wf == et@Wf_t + ep@Wf_p + es@Wf_s ---
    wft = wf_t[...]
    wfp = wf_p[...]
    wfs = wf_s[...]
    z = jnp.tanh(
        jnp.dot(et.astype(wft.dtype), wft, preferred_element_type=f32)
        + jnp.dot(ep.astype(wfp.dtype), wfp, preferred_element_type=f32)
        + jnp.dot(es.astype(wfs.dtype), wfs, preferred_element_type=f32)
        + bf[...].astype(f32))                      # (TM, Zp); padded lanes == 0

    # --- fuse decoder, split by output columns (== chunking fused_output) ---
    t_chunk = lt(z, wdf_t, bdf_t)                   # (TM, T2p)
    p_chunk = lt(z, wdf_p, bdf_p)                   # (TM, P2p)
    s_chunk = lt(z, wdf_s, bdf_s)                   # (TM, S2p)

    # --- modality decoders (final layers lane-padded) ---
    dec_t = lt(lt(t_chunk, wdt1, bdt1), wdt2, bdt2)  # (TM, Tout)
    dec_p = lt(lt(p_chunk, wdp1, bdp1), wdp2, bdp2)  # (TM, Pout)
    dec_s = lt(lt(s_chunk, wds1, bds1), wds2, bds2)  # (TM, Sout)

    dt = o_ref.dtype
    o_ref[:, off_t:off_t + w_t] = dec_t.astype(dt)
    o_ref[:, off_p:off_p + w_p] = dec_p.astype(dt)
    o_ref[:, off_s:off_s + w_s] = dec_s.astype(dt)
    o_ref[:, off_z:off_z + w_z] = z.astype(dt)


# ----------------------------------------------------------------------------
# Parameter construction (deterministic, PyTorch-style uniform init)
# ----------------------------------------------------------------------------
def _init_linear(key, in_dim, out_dim):
    kw, kb = jax.random.split(key)
    bound = 1.0 / jnp.sqrt(jnp.float32(in_dim))
    # stored as (in, out) == PyTorch weight.T
    w = jax.random.uniform(kw, (in_dim, out_dim), jnp.float32, -bound, bound)
    b = jax.random.uniform(kb, (1, out_dim), jnp.float32, -bound, bound)
    return w, b


def make_autoencoder_params(key, text_dim, text_dim1, text_dim2,
                            ppi_dim, ppi_dim1, ppi_dim2,
                            seq_dim, seq_dim1, seq_dim2, zdim):
    dims = [
        ("enc_text1", text_dim, text_dim1), ("enc_text2", text_dim1, text_dim2),
        ("enc_ppi1", ppi_dim, ppi_dim1),    ("enc_ppi2", ppi_dim1, ppi_dim2),
        ("enc_seq1", seq_dim, seq_dim1),    ("enc_seq2", seq_dim1, seq_dim2),
        ("enc_fuse", text_dim2 + ppi_dim2 + seq_dim2, zdim),
        ("dec_fuse", zdim, text_dim2 + ppi_dim2 + seq_dim2),
        ("dec_text1", text_dim2, text_dim1), ("dec_text2", text_dim1, text_dim),
        ("dec_ppi1", ppi_dim2, ppi_dim1),    ("dec_ppi2", ppi_dim1, ppi_dim),
        ("dec_seq1", seq_dim2, seq_dim1),    ("dec_seq2", seq_dim1, seq_dim),
    ]
    keys = jax.random.split(key, len(dims))
    params = {}
    for k, (name, din, dout) in zip(keys, dims):
        params[name] = _init_linear(k, din, dout)
    return params


# ----------------------------------------------------------------------------
# One-time parameter preparation (hoisted out of the forward path):
#   * split fuse layers by rows / columns (removes in-kernel concat/chunk)
#   * zero-pad every hidden/output width to a multiple of 128 lanes
#   * optionally cast weights to bf16 for MXU-native matmuls
# Exactness of the zero padding relies on tanh(0) == 0.
# ----------------------------------------------------------------------------
def prepare_params(params, dims, use_bf16=False):
    (Dt, Dt1, Dt2, Dp, Dp1, Dp2, Ds, Ds1, Ds2, Z) = dims
    pd = _padded_dims(dims)
    T1p, T2p = pd["T1p"], pd["T2p"]
    P1p, P2p = pd["P1p"], pd["P2p"]
    S1p, S2p = pd["S1p"], pd["S2p"]
    Zp, Tout, Pout, Sout = pd["Zp"], pd["Tout"], pd["Pout"], pd["Sout"]

    wdt = jnp.bfloat16 if use_bf16 else jnp.float32

    def padw(w, kp, np_):
        k, n = w.shape
        return jnp.pad(w, ((0, kp - k), (0, np_ - n))).astype(wdt)

    def padb(b, np_):
        n = b.shape[1]
        return jnp.pad(b, ((0, 0), (0, np_ - n))).astype(jnp.float32)

    p = {}
    # encoders (first-layer K stays at the natural input width)
    w, b = params["enc_text1"]; p["wt1"] = padw(w, Dt, T1p); p["bt1"] = padb(b, T1p)
    w, b = params["enc_text2"]; p["wt2"] = padw(w, T1p, T2p); p["bt2"] = padb(b, T2p)
    w, b = params["enc_ppi1"];  p["wp1"] = padw(w, Dp, P1p); p["bp1"] = padb(b, P1p)
    w, b = params["enc_ppi2"];  p["wp2"] = padw(w, P1p, P2p); p["bp2"] = padb(b, P2p)
    w, b = params["enc_seq1"];  p["ws1"] = padw(w, Ds, S1p); p["bs1"] = padb(b, S1p)
    w, b = params["enc_seq2"];  p["ws2"] = padw(w, S1p, S2p); p["bs2"] = padb(b, S2p)

    # encoder fuse: row-split over the three encoded chunks
    wf, bf = params["enc_fuse"]
    p["wf_t"] = padw(wf[:Dt2], T2p, Zp)
    p["wf_p"] = padw(wf[Dt2:Dt2 + Dp2], P2p, Zp)
    p["wf_s"] = padw(wf[Dt2 + Dp2:], S2p, Zp)
    p["bf"] = padb(bf, Zp)

    # decoder fuse: column-split into the three chunks
    wdf, bdf = params["dec_fuse"]
    p["wdf_t"] = padw(wdf[:, :Dt2], Zp, T2p);           p["bdf_t"] = padb(bdf[:, :Dt2], T2p)
    p["wdf_p"] = padw(wdf[:, Dt2:Dt2 + Dp2], Zp, P2p);  p["bdf_p"] = padb(bdf[:, Dt2:Dt2 + Dp2], P2p)
    p["wdf_s"] = padw(wdf[:, Dt2 + Dp2:], Zp, S2p);     p["bdf_s"] = padb(bdf[:, Dt2 + Dp2:], S2p)

    # modality decoders (final layers padded to lane-dense output widths)
    w, b = params["dec_text1"]; p["wdt1"] = padw(w, T2p, T1p); p["bdt1"] = padb(b, T1p)
    w, b = params["dec_text2"]; p["wdt2"] = padw(w, T1p, Tout); p["bdt2"] = padb(b, Tout)
    w, b = params["dec_ppi1"];  p["wdp1"] = padw(w, P2p, P1p); p["bdp1"] = padb(b, P1p)
    w, b = params["dec_ppi2"];  p["wdp2"] = padw(w, P1p, Pout); p["bdp2"] = padb(b, Pout)
    w, b = params["dec_seq1"];  p["wds1"] = padw(w, S2p, S1p); p["bds1"] = padb(b, S1p)
    w, b = params["dec_seq2"];  p["wds2"] = padw(w, S1p, Sout); p["bds2"] = padb(b, Sout)

    assert set(p.keys()) == set(_PARAM_ORDER)
    return p


# ----------------------------------------------------------------------------
# Forward pass: one pallas_call, batch-tiled grid, resident weights
# ----------------------------------------------------------------------------
@functools.partial(jax.jit, static_argnames=("dims",))
def autoencoder_forward(prepared, x_text, x_ppi, x_seq, dims):
    (Dt, Dt1, Dt2, Dp, Dp1, Dp2, Ds, Ds1, Ds2, Z) = dims
    pd = _padded_dims(dims)
    Zp, Tout, Pout, Sout = pd["Zp"], pd["Tout"], pd["Pout"], pd["Sout"]

    M = x_text.shape[0]

    # Batch tile: feed the MXU M-dimension (>=128/256 rows) when possible.
    if M >= 256:
        TM = 256
    elif M >= 128:
        TM = 128
    else:
        TM = _ru(M, 8)
    M_pad = _ru(M, TM)
    if M_pad != M:
        pad = ((0, M_pad - M), (0, 0))
        x_text = jnp.pad(x_text, pad)
        x_ppi = jnp.pad(x_ppi, pad)
        x_seq = jnp.pad(x_seq, pad)

    # Lane-dense output slab layout (all regions are multiples of 128).
    off_t, off_p, off_s = 0, Tout, Tout + Pout
    off_z = Tout + Pout + Sout
    slab_w = Tout + Pout + Sout + Zp

    w_ops = tuple(prepared[name] for name in _PARAM_ORDER)
    operands = (x_text, x_ppi, x_seq) + w_ops

    grid = (pl.cdiv(M_pad, TM),)
    in_specs = (
        [pl.BlockSpec((TM, Dt), lambda i: (i, 0)),
         pl.BlockSpec((TM, Dp), lambda i: (i, 0)),
         pl.BlockSpec((TM, Ds), lambda i: (i, 0))]
        # full-shape blocks + constant index_map => weights stay VMEM-resident
        + [pl.BlockSpec(a.shape, lambda i: (0, 0)) for a in w_ops])
    out_specs = pl.BlockSpec((TM, slab_w), lambda i: (i, 0))

    # Explicit VMEM budget (count weights twice for possible double buffers),
    # capped at 64 MiB so the same kernel is safe on v7x's smaller VMEM.
    param_bytes = sum(int(a.size) * a.dtype.itemsize for a in w_ops)
    act_tile_bytes = TM * (Dt + Dp + Ds + slab_w) * x_text.dtype.itemsize
    vmem_limit = int(2 * param_bytes + 4 * act_tile_bytes + (16 << 20))
    vmem_limit = max(32 << 20, min(vmem_limit, 64 << 20))

    # Advisory cost estimate for the XLA scheduler.
    layer_shapes = [
        (Dt, Dt1), (Dt1, Dt2), (Dp, Dp1), (Dp1, Dp2), (Ds, Ds1), (Ds1, Ds2),
        (Dt2 + Dp2 + Ds2, Z), (Z, Dt2 + Dp2 + Ds2),
        (Dt2, Dt1), (Dt1, Dt), (Dp2, Dp1), (Dp1, Dp), (Ds2, Ds1), (Ds1, Ds),
    ]
    flops = 2 * M_pad * sum(k * n for k, n in layer_shapes)
    transcendentals = M_pad * sum(n for _, n in layer_shapes)
    bytes_accessed = (param_bytes
                      + M_pad * (Dt + Dp + Ds) * x_text.dtype.itemsize
                      + M_pad * slab_w * x_text.dtype.itemsize)

    kernel = functools.partial(
        _autoencoder_kernel,
        off_t=off_t, off_p=off_p, off_s=off_s, off_z=off_z,
        w_t=Tout, w_p=Pout, w_s=Sout, w_z=Zp)

    slab = pl.pallas_call(
        kernel,
        out_shape=jax.ShapeDtypeStruct((M_pad, slab_w), x_text.dtype),
        grid=grid,
        in_specs=in_specs,
        out_specs=out_specs,
        compiler_params=pltpu.CompilerParams(
            dimension_semantics=("parallel",),   # megacore sharding on v7x
            vmem_limit_bytes=vmem_limit),
        cost_estimate=pl.CostEstimate(
            flops=flops, transcendentals=transcendentals,
            bytes_accessed=bytes_accessed),
    )(*operands)

    # Downstream consumers can read the lane-padded slab directly; these slices
    # only restore the module's natural output shapes.
    decoded_text = slab[:M, off_t:off_t + Dt]
    decoded_ppi = slab[:M, off_p:off_p + Dp]
    decoded_seq = slab[:M, off_s:off_s + Ds]
    z = slab[:M, off_z:off_z + Z]
    return decoded_text, decoded_ppi, decoded_seq, z


# ----------------------------------------------------------------------------
# Pure-JAX reference (mirrors the PyTorch forward: concat + single fuse matmul)
# ----------------------------------------------------------------------------
def _reference_forward(params, x_text, x_ppi, x_seq, text_dim2, ppi_dim2,
                       matmul_dtype=jnp.float32):
    hp = jax.lax.Precision.HIGHEST

    def lt(x, name):
        w, b = params[name]
        y = jnp.dot(x.astype(matmul_dtype), w.astype(matmul_dtype),
                    precision=hp, preferred_element_type=jnp.float32)
        return jnp.tanh(y + b)

    enc_text = lt(lt(x_text, "enc_text1"), "enc_text2")
    enc_ppi = lt(lt(x_ppi, "enc_ppi1"), "enc_ppi2")
    enc_seq = lt(lt(x_seq, "enc_seq1"), "enc_seq2")
    fused = jnp.concatenate([enc_text, enc_ppi, enc_seq], axis=1)
    z = lt(fused, "enc_fuse")
    out = lt(z, "dec_fuse")
    t = out[:, :text_dim2]
    p = out[:, text_dim2:text_dim2 + ppi_dim2]
    s = out[:, text_dim2 + ppi_dim2:]
    return (lt(lt(t, "dec_text1"), "dec_text2"),
            lt(lt(p, "dec_ppi1"), "dec_ppi2"),
            lt(lt(s, "dec_seq1"), "dec_seq2"),
            z)


if __name__ == "__main__":
    # Small shapes consistent with the module's structure.
    batch = 8
    text_dim, text_dim1, text_dim2 = 64, 48, 32
    ppi_dim, ppi_dim1, ppi_dim2 = 56, 56, 56
    seq_dim, seq_dim1, seq_dim2 = 64, 48, 32
    zdim = 32
    dims = (text_dim, text_dim1, text_dim2,
            ppi_dim, ppi_dim1, ppi_dim2,
            seq_dim, seq_dim1, seq_dim2, zdim)

    key = jax.random.PRNGKey(0)
    kp, kt, kpi, ks = jax.random.split(key, 4)

    params = make_autoencoder_params(kp, *dims)

    x_text = jax.random.normal(kt, (batch, text_dim), jnp.float32)
    x_ppi = jax.random.normal(kpi, (batch, ppi_dim), jnp.float32)
    x_seq = jax.random.normal(ks, (batch, seq_dim), jnp.float32)

    # --- f32 weights path ---
    prep_f32 = prepare_params(params, dims, use_bf16=False)
    outs = jax.block_until_ready(
        autoencoder_forward(prep_f32, x_text, x_ppi, x_seq, dims))
    refs = _reference_forward(params, x_text, x_ppi, x_seq,
                              text_dim2, ppi_dim2, jnp.float32)
    for o, r in zip(outs, refs):
        assert o.shape == r.shape, (o.shape, r.shape)
        err = jnp.max(jnp.abs(o - r))
        assert err < 3e-3, ("f32 mismatch", err)

    # --- bf16 weights/activations into the MXU (f32 accumulate + tanh) ---
    prep_bf16 = prepare_params(params, dims, use_bf16=True)
    outs16 = jax.block_until_ready(
        autoencoder_forward(prep_bf16, x_text, x_ppi, x_seq, dims))
    refs16 = _reference_forward(params, x_text, x_ppi, x_seq,
                                text_dim2, ppi_dim2, jnp.bfloat16)
    for o, r in zip(outs16, refs16):
        assert o.shape == r.shape, (o.shape, r.shape)
        err = jnp.max(jnp.abs(o - r))
        assert err < 2e-2, ("bf16 mismatch", err)

    print("KERNEL_OK")
</pallas_src>

<mosaic_0001>
module attributes {stable_mosaic.version = 11 : i64} {
  func.func @_autoencoder_kernel(%arg0: i32, %arg1: memref<8x64xf32, #tpu.memory_space<vmem>>, %arg2: memref<8x56xf32, #tpu.memory_space<vmem>>, %arg3: memref<8x64xf32, #tpu.memory_space<vmem>>, %arg4: memref<64x128xf32, #tpu.memory_space<vmem>>, %arg5: memref<1x128xf32, #tpu.memory_space<vmem>>, %arg6: memref<128x128xf32, #tpu.memory_space<vmem>>, %arg7: memref<1x128xf32, #tpu.memory_space<vmem>>, %arg8: memref<56x128xf32, #tpu.memory_space<vmem>>, %arg9: memref<1x128xf32, #tpu.memory_space<vmem>>, %arg10: memref<128x128xf32, #tpu.memory_space<vmem>>, %arg11: memref<1x128xf32, #tpu.memory_space<vmem>>, %arg12: memref<64x128xf32, #tpu.memory_space<vmem>>, %arg13: memref<1x128xf32, #tpu.memory_space<vmem>>, %arg14: memref<128x128xf32, #tpu.memory_space<vmem>>, %arg15: memref<1x128xf32, #tpu.memory_space<vmem>>, %arg16: memref<128x128xf32, #tpu.memory_space<vmem>>, %arg17: memref<128x128xf32, #tpu.memory_space<vmem>>, %arg18: memref<128x128xf32, #tpu.memory_space<vmem>>, %arg19: memref<1x128xf32, #tpu.memory_space<vmem>>, %arg20: memref<128x128xf32, #tpu.memory_space<vmem>>, %arg21: memref<1x128xf32, #tpu.memory_space<vmem>>, %arg22: memref<128x128xf32, #tpu.memory_space<vmem>>, %arg23: memref<1x128xf32, #tpu.memory_space<vmem>>, %arg24: memref<128x128xf32, #tpu.memory_space<vmem>>, %arg25: memref<1x128xf32, #tpu.memory_space<vmem>>, %arg26: memref<128x128xf32, #tpu.memory_space<vmem>>, %arg27: memref<1x128xf32, #tpu.memory_space<vmem>>, %arg28: memref<128x128xf32, #tpu.memory_space<vmem>>, %arg29: memref<1x128xf32, #tpu.memory_space<vmem>>, %arg30: memref<128x128xf32, #tpu.memory_space<vmem>>, %arg31: memref<1x128xf32, #tpu.memory_space<vmem>>, %arg32: memref<128x128xf32, #tpu.memory_space<vmem>>, %arg33: memref<1x128xf32, #tpu.memory_space<vmem>>, %arg34: memref<128x128xf32, #tpu.memory_space<vmem>>, %arg35: memref<1x128xf32, #tpu.memory_space<vmem>>, %arg36: memref<128x128xf32, #tpu.memory_space<vmem>>, %arg37: memref<1x128xf32, #tpu.memory_space<vmem>>, %arg38: memref<8x512xf32, #tpu.memory_space<vmem>>) attributes {dimension_semantics = [#tpu.dimension_semantics<parallel>], iteration_bounds = array<i64: 1>, scalar_prefetch = 0 : i64, scratch_operands = 0 : i64, tpu.core_type = #tpu.core_type<tc>, window_params = [{transform_indices = @transform_0, window_bounds = array<i64: 8, 64>}, {transform_indices = @transform_1, window_bounds = array<i64: 8, 56>}, {transform_indices = @transform_2, window_bounds = array<i64: 8, 64>}, {pipeline_mode = #tpu.pipeline_mode<synchronous>, transform_indices = @transform_3, window_bounds = array<i64: 64, 128>}, {pipeline_mode = #tpu.pipeline_mode<synchronous>, transform_indices = @transform_4, window_bounds = array<i64: 1, 128>}, {pipeline_mode = #tpu.pipeline_mode<synchronous>, transform_indices = @transform_5, window_bounds = array<i64: 128, 128>}, {pipeline_mode = #tpu.pipeline_mode<synchronous>, transform_indices = @transform_6, window_bounds = array<i64: 1, 128>}, {pipeline_mode = #tpu.pipeline_mode<synchronous>, transform_indices = @transform_7, window_bounds = array<i64: 56, 128>}, {pipeline_mode = #tpu.pipeline_mode<synchronous>, transform_indices = @transform_8, window_bounds = array<i64: 1, 128>}, {pipeline_mode = #tpu.pipeline_mode<synchronous>, transform_indices = @transform_9, window_bounds = array<i64: 128, 128>}, {pipeline_mode = #tpu.pipeline_mode<synchronous>, transform_indices = @transform_10, window_bounds = array<i64: 1, 128>}, {pipeline_mode = #tpu.pipeline_mode<synchronous>, transform_indices = @transform_11, window_bounds = array<i64: 64, 128>}, {pipeline_mode = #tpu.pipeline_mode<synchronous>, transform_indices = @transform_12, window_bounds = array<i64: 1, 128>}, {pipeline_mode = #tpu.pipeline_mode<synchronous>, transform_indices = @transform_13, window_bounds = array<i64: 128, 128>}, {pipeline_mode = #tpu.pipeline_mode<synchronous>, transform_indices = @transform_14, window_bounds = array<i64: 1, 128>}, {pipeline_mode = #tpu.pipeline_mode<synchronous>, transform_indices = @transform_15, window_bounds = array<i64: 128, 128>}, {pipeline_mode = #tpu.pipeline_mode<synchronous>, transform_indices = @transform_16, window_bounds = array<i64: 128, 128>}, {pipeline_mode = #tpu.pipeline_mode<synchronous>, transform_indices = @transform_17, window_bounds = array<i64: 128, 128>}, {pipeline_mode = #tpu.pipeline_mode<synchronous>, transform_indices = @transform_18, window_bounds = array<i64: 1, 128>}, {pipeline_mode = #tpu.pipeline_mode<synchronous>, transform_indices = @transform_19, window_bounds = array<i64: 128, 128>}, {pipeline_mode = #tpu.pipeline_mode<synchronous>, transform_indices = @transform_20, window_bounds = array<i64: 1, 128>}, {pipeline_mode = #tpu.pipeline_mode<synchronous>, transform_indices = @transform_21, window_bounds = array<i64: 128, 128>}, {pipeline_mode = #tpu.pipeline_mode<synchronous>, transform_indices = @transform_22, window_bounds = array<i64: 1, 128>}, {pipeline_mode = #tpu.pipeline_mode<synchronous>, transform_indices = @transform_23, window_bounds = array<i64: 128, 128>}, {pipeline_mode = #tpu.pipeline_mode<synchronous>, transform_indices = @transform_24, window_bounds = array<i64: 1, 128>}, {pipeline_mode = #tpu.pipeline_mode<synchronous>, transform_indices = @transform_25, window_bounds = array<i64: 128, 128>}, {pipeline_mode = #tpu.pipeline_mode<synchronous>, transform_indices = @transform_26, window_bounds = array<i64: 1, 128>}, {pipeline_mode = #tpu.pipeline_mode<synchronous>, transform_indices = @transform_27, window_bounds = array<i64: 128, 128>}, {pipeline_mode = #tpu.pipeline_mode<synchronous>, transform_indices = @transform_28, window_bounds = array<i64: 1, 128>}, {pipeline_mode = #tpu.pipeline_mode<synchronous>, transform_indices = @transform_29, window_bounds = array<i64: 128, 128>}, {pipeline_mode = #tpu.pipeline_mode<synchronous>, transform_indices = @transform_30, window_bounds = array<i64: 1, 128>}, {pipeline_mode = #tpu.pipeline_mode<synchronous>, transform_indices = @transform_31, window_bounds = array<i64: 128, 128>}, {pipeline_mode = #tpu.pipeline_mode<synchronous>, transform_indices = @transform_32, window_bounds = array<i64: 1, 128>}, {pipeline_mode = #tpu.pipeline_mode<synchronous>, transform_indices = @transform_33, window_bounds = array<i64: 128, 128>}, {pipeline_mode = #tpu.pipeline_mode<synchronous>, transform_indices = @transform_34, window_bounds = array<i64: 1, 128>}, {pipeline_mode = #tpu.pipeline_mode<synchronous>, transform_indices = @transform_35, window_bounds = array<i64: 128, 128>}, {pipeline_mode = #tpu.pipeline_mode<synchronous>, transform_indices = @transform_36, window_bounds = array<i64: 1, 128>}, {transform_indices = @transform_37, window_bounds = array<i64: 8, 512>}]} {
    %c0 = arith.constant 0 : index
    %c0_0 = arith.constant 0 : index
    %0 = vector.load %arg1[%c0, %c0_0] : memref<8x64xf32, #tpu.memory_space<vmem>>, vector<8x64xf32>
    %c0_1 = arith.constant 0 : index
    %c0_2 = arith.constant 0 : index
    %1 = vector.load %arg4[%c0_1, %c0_2] : memref<64x128xf32, #tpu.memory_space<vmem>>, vector<64x128xf32>
    %cst = arith.constant dense<0.000000e+00> : vector<8x128xf32>
    %2 = tpu.matmul %0, %1, %cst {dimension_numbers = #tpu.dot_dimension_numbers<[1], [0], [0], [1], [0, 0, 1, 1], [], []>} : vector<8x64xf32>, vector<64x128xf32>, vector<8x128xf32> -> vector<8x128xf32>
    %c0_3 = arith.constant 0 : index
    %c0_4 = arith.constant 0 : index
    %3 = vector.load %arg5[%c0_3, %c0_4] : memref<1x128xf32, #tpu.memory_space<vmem>>, vector<1x128xf32>
    %4 = vector.broadcast %3 : vector<1x128xf32> to vector<8x128xf32>
    %5 = arith.addf %2, %4 : vector<8x128xf32>
    %6 = math.tanh %5 : vector<8x128xf32>
    %c0_5 = arith.constant 0 : index
    %c0_6 = arith.constant 0 : index
    %7 = vector.load %arg6[%c0_5, %c0_6] : memref<128x128xf32, #tpu.memory_space<vmem>>, vector<128x128xf32>
    %cst_7 = arith.constant dense<0.000000e+00> : vector<8x128xf32>
    %8 = tpu.matmul %6, %7, %cst_7 {dimension_numbers = #tpu.dot_dimension_numbers<[1], [0], [0], [1], [0, 0, 1, 1], [], []>} : vector<8x128xf32>, vector<128x128xf32>, vector<8x128xf32> -> vector<8x128xf32>
    %c0_8 = arith.constant 0 : index
    %c0_9 = arith.constant 0 : index
    %9 = vector.load %arg7[%c0_8, %c0_9] : memref<1x128xf32, #tpu.memory_space<vmem>>, vector<1x128xf32>
    %10 = vector.broadcast %9 : vector<1x128xf32> to vector<8x128xf32>
    %11 = arith.addf %8, %10 : vector<8x128xf32>
    %12 = math.tanh %11 : vector<8x128xf32>
    %c0_10 = arith.constant 0 : index
    %c0_11 = arith.constant 0 : index
    %13 = vector.load %arg2[%c0_10, %c0_11] : memref<8x56xf32, #tpu.memory_space<vmem>>, vector<8x56xf32>
    %c0_12 = arith.constant 0 : index
    %c0_13 = arith.constant 0 : index
    %14 = vector.load %arg8[%c0_12, %c0_13] : memref<56x128xf32, #tpu.memory_space<vmem>>, vector<56x128xf32>
    %cst_14 = arith.constant dense<0.000000e+00> : vector<8x128xf32>
    %15 = tpu.matmul %13, %14, %cst_14 {dimension_numbers = #tpu.dot_dimension_numbers<[1], [0], [0], [1], [0, 0, 1, 1], [], []>} : vector<8x56xf32>, vector<56x128xf32>, vector<8x128xf32> -> vector<8x128xf32>
    %c0_15 = arith.constant 0 : index
    %c0_16 = arith.constant 0 : index
    %16 = vector.load %arg9[%c0_15, %c0_16] : memref<1x128xf32, #tpu.memory_space<vmem>>, vector<1x128xf32>
    %17 = vector.broadcast %16 : vector<1x128xf32> to vector<8x128xf32>
    %18 = arith.addf %15, %17 : vector<8x128xf32>
    %19 = math.tanh %18 : vector<8x128xf32>
    %c0_17 = arith.constant 0 : index
    %c0_18 = arith.constant 0 : index
    %20 = vector.load %arg10[%c0_17, %c0_18] : memref<128x128xf32, #tpu.memory_space<vmem>>, vector<128x128xf32>
    %cst_19 = arith.constant dense<0.000000e+00> : vector<8x128xf32>
    %21 = tpu.matmul %19, %20, %cst_19 {dimension_numbers = #tpu.dot_dimension_numbers<[1], [0], [0], [1], [0, 0, 1, 1], [], []>} : vector<8x128xf32>, vector<128x128xf32>, vector<8x128xf32> -> vector<8x128xf32>
    %c0_20 = arith.constant 0 : index
    %c0_21 = arith.constant 0 : index
    %22 = vector.load %arg11[%c0_20, %c0_21] : memref<1x128xf32, #tpu.memory_space<vmem>>, vector<1x128xf32>
    %23 = vector.broadcast %22 : vector<1x128xf32> to vector<8x128xf32>
    %24 = arith.addf %21, %23 : vector<8x128xf32>
    %25 = math.tanh %24 : vector<8x128xf32>
    %c0_22 = arith.constant 0 : index
    %c0_23 = arith.constant 0 : index
    %26 = vector.load %arg3[%c0_22, %c0_23] : memref<8x64xf32, #tpu.memory_space<vmem>>, vector<8x64xf32>
    %c0_24 = arith.constant 0 : index
    %c0_25 = arith.constant 0 : index
    %27 = vector.load %arg12[%c0_24, %c0_25] : memref<64x128xf32, #tpu.memory_space<vmem>>, vector<64x128xf32>
    %cst_26 = arith.constant dense<0.000000e+00> : vector<8x128xf32>
    %28 = tpu.matmul %26, %27, %cst_26 {dimension_numbers = #tpu.dot_dimension_numbers<[1], [0], [0], [1], [0, 0, 1, 1], [], []>} : vector<8x64xf32>, vector<64x128xf32>, vector<8x128xf32> -> vector<8x128xf32>
    %c0_27 = arith.constant 0 : index
    %c0_28 = arith.constant 0 : index
    %29 = vector.load %arg13[%c0_27, %c0_28] : memref<1x128xf32, #tpu.memory_space<vmem>>, vector<1x128xf32>
    %30 = vector.broadcast %29 : vector<1x128xf32> to vector<8x128xf32>
    %31 = arith.addf %28, %30 : vector<8x128xf32>
    %32 = math.tanh %31 : vector<8x128xf32>
    %c0_29 = arith.constant 0 : index
    %c0_30 = arith.constant 0 : index
    %33 = vector.load %arg14[%c0_29, %c0_30] : memref<128x128xf32, #tpu.memory_space<vmem>>, vector<128x128xf32>
    %cst_31 = arith.constant dense<0.000000e+00> : vector<8x128xf32>
    %34 = tpu.matmul %32, %33, %cst_31 {dimension_numbers = #tpu.dot_dimension_numbers<[1], [0], [0], [1], [0, 0, 1, 1], [], []>} : vector<8x128xf32>, vector<128x128xf32>, vector<8x128xf32> -> vector<8x128xf32>
    %c0_32 = arith.constant 0 : index
    %c0_33 = arith.constant 0 : index
    %35 = vector.load %arg15[%c0_32, %c0_33] : memref<1x128xf32, #tpu.memory_space<vmem>>, vector<1x128xf32>
    %36 = vector.broadcast %35 : vector<1x128xf32> to vector<8x128xf32>
    %37 = arith.addf %34, %36 : vector<8x128xf32>
    %38 = math.tanh %37 : vector<8x128xf32>
    %c0_34 = arith.constant 0 : index
    %c0_35 = arith.constant 0 : index
    %39 = vector.load %arg16[%c0_34, %c0_35] : memref<128x128xf32, #tpu.memory_space<vmem>>, vector<128x128xf32>
    %c0_36 = arith.constant 0 : index
    %c0_37 = arith.constant 0 : index
    %40 = vector.load %arg17[%c0_36, %c0_37] : memref<128x128xf32, #tpu.memory_space<vmem>>, vector<128x128xf32>
    %c0_38 = arith.constant 0 : index
    %c0_39 = arith.constant 0 : index
    %41 = vector.load %arg18[%c0_38, %c0_39] : memref<128x128xf32, #tpu.memory_space<vmem>>, vector<128x128xf32>
    %cst_40 = arith.constant dense<0.000000e+00> : vector<8x128xf32>
    %42 = tpu.matmul %12, %39, %cst_40 {dimension_numbers = #tpu.dot_dimension_numbers<[1], [0], [0], [1], [0, 0, 1, 1], [], []>} : vector<8x128xf32>, vector<128x128xf32>, vector<8x128xf32> -> vector<8x128xf32>
    %cst_41 = arith.constant dense<0.000000e+00> : vector<8x128xf32>
    %43 = tpu.matmul %25, %40, %cst_41 {dimension_numbers = #tpu.dot_dimension_numbers<[1], [0], [0], [1], [0, 0, 1, 1], [], []>} : vector<8x128xf32>, vector<128x128xf32>, vector<8x128xf32> -> vector<8x128xf32>
    %44 = arith.addf %42, %43 : vector<8x128xf32>
    %cst_42 = arith.constant dense<0.000000e+00> : vector<8x128xf32>
    %45 = tpu.matmul %38, %41, %cst_42 {dimension_numbers = #tpu.dot_dimension_numbers<[1], [0], [0], [1], [0, 0, 1, 1], [], []>} : vector<8x128xf32>, vector<128x128xf32>, vector<8x128xf32> -> vector<8x128xf32>
    %46 = arith.addf %44, %45 : vector<8x128xf32>
    %c0_43 = arith.constant 0 : index
    %c0_44 = arith.constant 0 : index
    %47 = vector.load %arg19[%c0_43, %c0_44] : memref<1x128xf32, #tpu.memory_space<vmem>>, vector<1x128xf32>
    %48 = vector.broadcast %47 : vector<1x128xf32> to vector<8x128xf32>
    %49 = arith.addf %46, %48 : vector<8x128xf32>
    %50 = math.tanh %49 : vector<8x128xf32>
    %c0_45 = arith.constant 0 : index
    %c0_46 = arith.constant 0 : index
    %51 = vector.load %arg20[%c0_45, %c0_46] : memref<128x128xf32, #tpu.memory_space<vmem>>, vector<128x128xf32>
    %cst_47 = arith.constant dense<0.000000e+00> : vector<8x128xf32>
    %52 = tpu.matmul %50, %51, %cst_47 {dimension_numbers = #tpu.dot_dimension_numbers<[1], [0], [0], [1], [0, 0, 1, 1], [], []>} : vector<8x128xf32>, vector<128x128xf32>, vector<8x128xf32> -> vector<8x128xf32>
    %c0_48 = arith.constant 0 : index
    %c0_49 = arith.constant 0 : index
    %53 = vector.load %arg21[%c0_48, %c0_49] : memref<1x128xf32, #tpu.memory_space<vmem>>, vector<1x128xf32>
    %54 = vector.broadcast %53 : vector<1x128xf32> to vector<8x128xf32>
    %55 = arith.addf %52, %54 : vector<8x128xf32>
    %56 = math.tanh %55 : vector<8x128xf32>
    %c0_50 = arith.constant 0 : index
    %c0_51 = arith.constant 0 : index
    %57 = vector.load %arg22[%c0_50, %c0_51] : memref<128x128xf32, #tpu.memory_space<vmem>>, vector<128x128xf32>
    %cst_52 = arith.constant dense<0.000000e+00> : vector<8x128xf32>
    %58 = tpu.matmul %50, %57, %cst_52 {dimension_numbers = #tpu.dot_dimension_numbers<[1], [0], [0], [1], [0, 0, 1, 1], [], []>} : vector<8x128xf32>, vector<128x128xf32>, vector<8x128xf32> -> vector<8x128xf32>
    %c0_53 = arith.constant 0 : index
    %c0_54 = arith.constant 0 : index
    %59 = vector.load %arg23[%c0_53, %c0_54] : memref<1x128xf32, #tpu.memory_space<vmem>>, vector<1x128xf32>
    %60 = vector.broadcast %59 : vector<1x128xf32> to vector<8x128xf32>
    %61 = arith.addf %58, %60 : vector<8x128xf32>
    %62 = math.tanh %61 : vector<8x128xf32>
    %c0_55 = arith.constant 0 : index
    %c0_56 = arith.constant 0 : index
    %63 = vector.load %arg24[%c0_55, %c0_56] : memref<128x128xf32, #tpu.memory_space<vmem>>, vector<128x128xf32>
    %cst_57 = arith.constant dense<0.000000e+00> : vector<8x128xf32>
    %64 = tpu.matmul %50, %63, %cst_57 {dimension_numbers = #tpu.dot_dimension_numbers<[1], [0], [0], [1], [0, 0, 1, 1], [], []>} : vector<8x128xf32>, vector<128x128xf32>, vector<8x128xf32> -> vector<8x128xf32>
    %c0_58 = arith.constant 0 : index
    %c0_59 = arith.constant 0 : index
    %65 = vector.load %arg25[%c0_58, %c0_59] : memref<1x128xf32, #tpu.memory_space<vmem>>, vector<1x128xf32>
    %66 = vector.broadcast %65 : vector<1x128xf32> to vector<8x128xf32>
    %67 = arith.addf %64, %66 : vector<8x128xf32>
    %68 = math.tanh %67 : vector<8x128xf32>
    %c0_60 = arith.constant 0 : index
    %c0_61 = arith.constant 0 : index
    %69 = vector.load %arg26[%c0_60, %c0_61] : memref<128x128xf32, #tpu.memory_space<vmem>>, vector<128x128xf32>
    %cst_62 = arith.constant dense<0.000000e+00> : vector<8x128xf32>
    %70 = tpu.matmul %56, %69, %cst_62 {dimension_numbers = #tpu.dot_dimension_numbers<[1], [0], [0], [1], [0, 0, 1, 1], [], []>} : vector<8x128xf32>, vector<128x128xf32>, vector<8x128xf32> -> vector<8x128xf32>
    %c0_63 = arith.constant 0 : index
    %c0_64 = arith.constant 0 : index
    %71 = vector.load %arg27[%c0_63, %c0_64] : memref<1x128xf32, #tpu.memory_space<vmem>>, vector<1x128xf32>
    %72 = vector.broadcast %71 : vector<1x128xf32> to vector<8x128xf32>
    %73 = arith.addf %70, %72 : vector<8x128xf32>
    %74 = math.tanh %73 : vector<8x128xf32>
    %c0_65 = arith.constant 0 : index
    %c0_66 = arith.constant 0 : index
    %75 = vector.load %arg28[%c0_65, %c0_66] : memref<128x128xf32, #tpu.memory_space<vmem>>, vector<128x128xf32>
    %cst_67 = arith.constant dense<0.000000e+00> : vector<8x128xf32>
    %76 = tpu.matmul %74, %75, %cst_67 {dimension_numbers = #tpu.dot_dimension_numbers<[1], [0], [0], [1], [0, 0, 1, 1], [], []>} : vector<8x128xf32>, vector<128x128xf32>, vector<8x128xf32> -> vector<8x128xf32>
    %c0_68 = arith.constant 0 : index
    %c0_69 = arith.constant 0 : index
    %77 = vector.load %arg29[%c0_68, %c0_69] : memref<1x128xf32, #tpu.memory_space<vmem>>, vector<1x128xf32>
    %78 = vector.broadcast %77 : vector<1x128xf32> to vector<8x128xf32>
    %79 = arith.addf %76, %78 : vector<8x128xf32>
    %80 = math.tanh %79 : vector<8x128xf32>
    %c0_70 = arith.constant 0 : index
    %c0_71 = arith.constant 0 : index
    %81 = vector.load %arg30[%c0_70, %c0_71] : memref<128x128xf32, #tpu.memory_space<vmem>>, vector<128x128xf32>
    %cst_72 = arith.constant dense<0.000000e+00> : vector<8x128xf32>
    %82 = tpu.matmul %62, %81, %cst_72 {dimension_numbers = #tpu.dot_dimension_numbers<[1], [0], [0], [1], [0, 0, 1, 1], [], []>} : vector<8x128xf32>, vector<128x128xf32>, vector<8x128xf32> -> vector<8x128xf32>
    %c0_73 = arith.constant 0 : index
    %c0_74 = arith.constant 0 : index
    %83 = vector.load %arg31[%c0_73, %c0_74] : memref<1x128xf32, #tpu.memory_space<vmem>>, vector<1x128xf32>
    %84 = vector.broadcast %83 : vector<1x128xf32> to vector<8x128xf32>
    %85 = arith.addf %82, %84 : vector<8x128xf32>
    %86 = math.tanh %85 : vector<8x128xf32>
    %c0_75 = arith.constant 0 : index
    %c0_76 = arith.constant 0 : index
    %87 = vector.load %arg32[%c0_75, %c0_76] : memref<128x128xf32, #tpu.memory_space<vmem>>, vector<128x128xf32>
    %cst_77 = arith.constant dense<0.000000e+00> : vector<8x128xf32>
    %88 = tpu.matmul %86, %87, %cst_77 {dimension_numbers = #tpu.dot_dimension_numbers<[1], [0], [0], [1], [0, 0, 1, 1], [], []>} : vector<8x128xf32>, vector<128x128xf32>, vector<8x128xf32> -> vector<8x128xf32>
    %c0_78 = arith.constant 0 : index
    %c0_79 = arith.constant 0 : index
    %89 = vector.load %arg33[%c0_78, %c0_79] : memref<1x128xf32, #tpu.memory_space<vmem>>, vector<1x128xf32>
    %90 = vector.broadcast %89 : vector<1x128xf32> to vector<8x128xf32>
    %91 = arith.addf %88, %90 : vector<8x128xf32>
    %92 = math.tanh %91 : vector<8x128xf32>
    %c0_80 = arith.constant 0 : index
    %c0_81 = arith.constant 0 : index
    %93 = vector.load %arg34[%c0_80, %c0_81] : memref<128x128xf32, #tpu.memory_space<vmem>>, vector<128x128xf32>
    %cst_82 = arith.constant dense<0.000000e+00> : vector<8x128xf32>
    %94 = tpu.matmul %68, %93, %cst_82 {dimension_numbers = #tpu.dot_dimension_numbers<[1], [0], [0], [1], [0, 0, 1, 1], [], []>} : vector<8x128xf32>, vector<128x128xf32>, vector<8x128xf32> -> vector<8x128xf32>
    %c0_83 = arith.constant 0 : index
    %c0_84 = arith.constant 0 : index
    %95 = vector.load %arg35[%c0_83, %c0_84] : memref<1x128xf32, #tpu.memory_space<vmem>>, vector<1x128xf32>
    %96 = vector.broadcast %95 : vector<1x128xf32> to vector<8x128xf32>
    %97 = arith.addf %94, %96 : vector<8x128xf32>
    %98 = math.tanh %97 : vector<8x128xf32>
    %c0_85 = arith.constant 0 : index
    %c0_86 = arith.constant 0 : index
    %99 = vector.load %arg36[%c0_85, %c0_86] : memref<128x128xf32, #tpu.memory_space<vmem>>, vector<128x128xf32>
    %cst_87 = arith.constant dense<0.000000e+00> : vector<8x128xf32>
    %100 = tpu.matmul %98, %99, %cst_87 {dimension_numbers = #tpu.dot_dimension_numbers<[1], [0], [0], [1], [0, 0, 1, 1], [], []>} : vector<8x128xf32>, vector<128x128xf32>, vector<8x128xf32> -> vector<8x128xf32>
    %c0_88 = arith.constant 0 : index
    %c0_89 = arith.constant 0 : index
    %101 = vector.load %arg37[%c0_88, %c0_89] : memref<1x128xf32, #tpu.memory_space<vmem>>, vector<1x128xf32>
    %102 = vector.broadcast %101 : vector<1x128xf32> to vector<8x128xf32>
    %103 = arith.addf %100, %102 : vector<8x128xf32>
    %104 = math.tanh %103 : vector<8x128xf32>
    %c0_90 = arith.constant 0 : index
    %c0_91 = arith.constant 0 : index
    %105 = vector.load %arg38[%c0_90, %c0_91] : memref<8x512xf32, #tpu.memory_space<vmem>>, vector<8x128xf32>
    tpu.vector_store %arg38[%c0_90, %c0_91], %80 {strides = array<i32>} : memref<8x512xf32, #tpu.memory_space<vmem>>, vector<8x128xf32>,
    %c0_92 = arith.constant 0 : index
    %c128 = arith.constant 128 : index
    %106 = vector.load %arg38[%c0_92, %c128] : memref<8x512xf32, #tpu.memory_space<vmem>>, vector<8x128xf32>
    tpu.vector_store %arg38[%c0_92, %c128], %92 {strides = array<i32>} : memref<8x512xf32, #tpu.memory_space<vmem>>, vector<8x128xf32>,
    %c0_93 = arith.constant 0 : index
    %c256 = arith.constant 256 : index
    %107 = vector.load %arg38[%c0_93, %c256] : memref<8x512xf32, #tpu.memory_space<vmem>>, vector<8x128xf32>
    tpu.vector_store %arg38[%c0_93, %c256], %104 {strides = array<i32>} : memref<8x512xf32, #tpu.memory_space<vmem>>, vector<8x128xf32>,
    %c0_94 = arith.constant 0 : index
    %c384 = arith.constant 384 : index
    %108 = vector.load %arg38[%c0_94, %c384] : memref<8x512xf32, #tpu.memory_space<vmem>>, vector<8x128xf32>
    tpu.vector_store %arg38[%c0_94, %c384], %50 {strides = array<i32>} : memref<8x512xf32, #tpu.memory_space<vmem>>, vector<8x128xf32>,
    return
  }
  func.func @transform_0(%arg0: i32) -> (i32, i32) {
    %c0_i32 = arith.constant 0 : i32
    %c0_i32_0 = arith.constant 0 : i32
    return %arg0, %c0_i32 : i32, i32
  }
  func.func @transform_1(%arg0: i32) -> (i32, i32) {
    %c0_i32 = arith.constant 0 : i32
    %c0_i32_0 = arith.constant 0 : i32
    return %arg0, %c0_i32 : i32, i32
  }
  func.func @transform_2(%arg0: i32) -> (i32, i32) {
    %c0_i32 = arith.constant 0 : i32
    %c0_i32_0 = arith.constant 0 : i32
    return %arg0, %c0_i32 : i32, i32
  }
  func.func @transform_3(%arg0: i32) -> (i32, i32) {
    %c0_i32 = arith.constant 0 : i32
    %c0_i32_0 = arith.constant 0 : i32
    %c0_i32_1 = arith.constant 0 : i32
    return %c0_i32, %c0_i32_0 : i32, i32
  }
  func.func @transform_4(%arg0: i32) -> (i32, i32) {
    %c0_i32 = arith.constant 0 : i32
    %c0_i32_0 = arith.constant 0 : i32
    %c0_i32_1 = arith.constant 0 : i32
    return %c0_i32, %c0_i32_0 : i32, i32
  }
  func.func @transform_5(%arg0: i32) -> (i32, i32) {
    %c0_i32 = arith.constant 0 : i32
    %c0_i32_0 = arith.constant 0 : i32
    %c0_i32_1 = arith.constant 0 : i32
    return %c0_i32, %c0_i32_0 : i32, i32
  }
  func.func @transform_6(%arg0: i32) -> (i32, i32) {
    %c0_i32 = arith.constant 0 : i32
    %c0_i32_0 = arith.constant 0 : i32
    %c0_i32_1 = arith.constant 0 : i32
    return %c0_i32, %c0_i32_0 : i32, i32
  }
  func.func @transform_7(%arg0: i32) -> (i32, i32) {
    %c0_i32 = arith.constant 0 : i32
    %c0_i32_0 = arith.constant 0 : i32
    %c0_i32_1 = arith.constant 0 : i32
    return %c0_i32, %c0_i32_0 : i32, i32
  }
  func.func @transform_8(%arg0: i32) -> (i32, i32) {
    %c0_i32 = arith.constant 0 : i32
    %c0_i32_0 = arith.constant 0 : i32
    %c0_i32_1 = arith.constant 0 : i32
    return %c0_i32, %c0_i32_0 : i32, i32
  }
  func.func @transform_9(%arg0: i32) -> (i32, i32) {
    %c0_i32 = arith.constant 0 : i32
    %c0_i32_0 = arith.constant 0 : i32
    %c0_i32_1 = arith.constant 0 : i32
    return %c0_i32, %c0_i32_0 : i32, i32
  }
  func.func @transform_10(%arg0: i32) -> (i32, i32) {
    %c0_i32 = arith.constant 0 : i32
    %c0_i32_0 = arith.constant 0 : i32
    %c0_i32_1 = arith.constant 0 : i32
    return %c0_i32, %c0_i32_0 : i32, i32
  }
  func.func @transform_11(%arg0: i32) -> (i32, i32) {
    %c0_i32 = arith.constant 0 : i32
    %c0_i32_0 = arith.constant 0 : i32
    %c0_i32_1 = arith.constant 0 : i32
    return %c0_i32, %c0_i32_0 : i32, i32
  }
  func.func @transform_12(%arg0: i32) -> (i32, i32) {
    %c0_i32 = arith.constant 0 : i32
    %c0_i32_0 = arith.constant 0 : i32
    %c0_i32_1 = arith.constant 0 : i32
    return %c0_i32, %c0_i32_0 : i32, i32
  }
  func.func @transform_13(%arg0: i32) -> (i32, i32) {
    %c0_i32 = arith.constant 0 : i32
    %c0_i32_0 = arith.constant 0 : i32
    %c0_i32_1 = arith.constant 0 : i32
    return %c0_i32, %c0_i32_0 : i32, i32
  }
  func.func @transform_14(%arg0: i32) -> (i32, i32) {
    %c0_i32 = arith.constant 0 : i32
    %c0_i32_0 = arith.constant 0 : i32
    %c0_i32_1 = arith.constant 0 : i32
    return %c0_i32, %c0_i32_0 : i32, i32
  }
  func.func @transform_15(%arg0: i32) -> (i32, i32) {
    %c0_i32 = arith.constant 0 : i32
    %c0_i32_0 = arith.constant 0 : i32
    %c0_i32_1 = arith.constant 0 : i32
    return %c0_i32, %c0_i32_0 : i32, i32
  }
  func.func @transform_16(%arg0: i32) -> (i32, i32) {
    %c0_i32 = arith.constant 0 : i32
    %c0_i32_0 = arith.constant 0 : i32
    %c0_i32_1 = arith.constant 0 : i32
    return %c0_i32, %c0_i32_0 : i32, i32
  }
  func.func @transform_17(%arg0: i32) -> (i32, i32) {
    %c0_i32 = arith.constant 0 : i32
    %c0_i32_0 = arith.constant 0 : i32
    %c0_i32_1 = arith.constant 0 : i32
    return %c0_i32, %c0_i32_0 : i32, i32
  }
  func.func @transform_18(%arg0: i32) -> (i32, i32) {
    %c0_i32 = arith.constant 0 : i32
    %c0_i32_0 = arith.constant 0 : i32
    %c0_i32_1 = arith.constant 0 : i32
    return %c0_i32, %c0_i32_0 : i32, i32
  }
  func.func @transform_19(%arg0: i32) -> (i32, i32) {
    %c0_i32 = arith.constant 0 : i32
    %c0_i32_0 = arith.constant 0 : i32
    %c0_i32_1 = arith.constant 0 : i32
    return %c0_i32, %c0_i32_0 : i32, i32
  }
  func.func @transform_20(%arg0: i32) -> (i32, i32) {
    %c0_i32 = arith.constant 0 : i32
    %c0_i32_0 = arith.constant 0 : i32
    %c0_i32_1 = arith.constant 0 : i32
    return %c0_i32, %c0_i32_0 : i32, i32
  }
  func.func @transform_21(%arg0: i32) -> (i32, i32) {
    %c0_i32 = arith.constant 0 : i32
    %c0_i32_0 = arith.constant 0 : i32
    %c0_i32_1 = arith.constant 0 : i32
    return %c0_i32, %c0_i32_0 : i32, i32
  }
  func.func @transform_22(%arg0: i32) -> (i32, i32) {
    %c0_i32 = arith.constant 0 : i32
    %c0_i32_0 = arith.constant 0 : i32
    %c0_i32_1 = arith.constant 0 : i32
    return %c0_i32, %c0_i32_0 : i32, i32
  }
  func.func @transform_23(%arg0: i32) -> (i32, i32) {
    %c0_i32 = arith.constant 0 : i32
    %c0_i32_0 = arith.constant 0 : i32
    %c0_i32_1 = arith.constant 0 : i32
    return %c0_i32, %c0_i32_0 : i32, i32
  }
  func.func @transform_24(%arg0: i32) -> (i32, i32) {
    %c0_i32 = arith.constant 0 : i32
    %c0_i32_0 = arith.constant 0 : i32
    %c0_i32_1 = arith.constant 0 : i32
    return %c0_i32, %c0_i32_0 : i32, i32
  }
  func.func @transform_25(%arg0: i32) -> (i32, i32) {
    %c0_i32 = arith.constant 0 : i32
    %c0_i32_0 = arith.constant 0 : i32
    %c0_i32_1 = arith.constant 0 : i32
    return %c0_i32, %c0_i32_0 : i32, i32
  }
  func.func @transform_26(%arg0: i32) -> (i32, i32) {
    %c0_i32 = arith.constant 0 : i32
    %c0_i32_0 = arith.constant 0 : i32
    %c0_i32_1 = arith.constant 0 : i32
    return %c0_i32, %c0_i32_0 : i32, i32
  }
  func.func @transform_27(%arg0: i32) -> (i32, i32) {
    %c0_i32 = arith.constant 0 : i32
    %c0_i32_0 = arith.constant 0 : i32
    %c0_i32_1 = arith.constant 0 : i32
    return %c0_i32, %c0_i32_0 : i32, i32
  }
  func.func @transform_28(%arg0: i32) -> (i32, i32) {
    %c0_i32 = arith.constant 0 : i32
    %c0_i32_0 = arith.constant 0 : i32
    %c0_i32_1 = arith.constant 0 : i32
    return %c0_i32, %c0_i32_0 : i32, i32
  }
  func.func @transform_29(%arg0: i32) -> (i32, i32) {
    %c0_i32 = arith.constant 0 : i32
    %c0_i32_0 = arith.constant 0 : i32
    %c0_i32_1 = arith.constant 0 : i32
    return %c0_i32, %c0_i32_0 : i32, i32
  }
  func.func @transform_30(%arg0: i32) -> (i32, i32) {
    %c0_i32 = arith.constant 0 : i32
    %c0_i32_0 = arith.constant 0 : i32
    %c0_i32_1 = arith.constant 0 : i32
    return %c0_i32, %c0_i32_0 : i32, i32
  }
  func.func @transform_31(%arg0: i32) -> (i32, i32) {
    %c0_i32 = arith.constant 0 : i32
    %c0_i32_0 = arith.constant 0 : i32
    %c0_i32_1 = arith.constant 0 : i32
    return %c0_i32, %c0_i32_0 : i32, i32
  }
  func.func @transform_32(%arg0: i32) -> (i32, i32) {
    %c0_i32 = arith.constant 0 : i32
    %c0_i32_0 = arith.constant 0 : i32
    %c0_i32_1 = arith.constant 0 : i32
    return %c0_i32, %c0_i32_0 : i32, i32
  }
  func.func @transform_33(%arg0: i32) -> (i32, i32) {
    %c0_i32 = arith.constant 0 : i32
    %c0_i32_0 = arith.constant 0 : i32
    %c0_i32_1 = arith.constant 0 : i32
    return %c0_i32, %c0_i32_0 : i32, i32
  }
  func.func @transform_34(%arg0: i32) -> (i32, i32) {
    %c0_i32 = arith.constant 0 : i32
    %c0_i32_0 = arith.constant 0 : i32
    %c0_i32_1 = arith.constant 0 : i32
    return %c0_i32, %c0_i32_0 : i32, i32
  }
  func.func @transform_35(%arg0: i32) -> (i32, i32) {
    %c0_i32 = arith.constant 0 : i32
    %c0_i32_0 = arith.constant 0 : i32
    %c0_i32_1 = arith.constant 0 : i32
    return %c0_i32, %c0_i32_0 : i32, i32
  }
  func.func @transform_36(%arg0: i32) -> (i32, i32) {
    %c0_i32 = arith.constant 0 : i32
    %c0_i32_0 = arith.constant 0 : i32
    %c0_i32_1 = arith.constant 0 : i32
    return %c0_i32, %c0_i32_0 : i32, i32
  }
  func.func @transform_37(%arg0: i32) -> (i32, i32) {
    %c0_i32 = arith.constant 0 : i32
    %c0_i32_0 = arith.constant 0 : i32
    return %arg0, %c0_i32 : i32, i32
  }
}

</mosaic_0001>

<llo_original>
// kernel: autoencoder_forward.1
$region0: #{autoencoder_forward.1}
  #allocation0 [shape = 'u32[]', space=smem, size = 0x4, offset = 0x4, fixed_abs, tag = 'smem constant byte address 0x4 - core index']
  #allocation1 [shape = 'u32[144,128]{1,0:T(1,128)}', space=vmem, size = 0x12000, scoped, tag = 'internal scratch']
  %s0 = inlined_call_operand.smem [shape: u32[38], index: -1, kind: input, shape index: {}]
  %s1 = sld [smem:[%s0]]
  %s2 = scalar_lea.smem %s0, 1
  %s3 = sld [smem:[%s2]]
  %s4 = scalar_lea.smem %s0, 2
  %s5 = sld [smem:[%s4]]
  %s6 = scalar_lea.smem %s0, 3
  %s7 = sld [smem:[%s6]]
  %s8 = scalar_lea.smem %s0, 4
  %s9 = sld [smem:[%s8]]
  %s10 = scalar_lea.smem %s0, 5
  %s11 = sld [smem:[%s10]]
  %s12 = scalar_lea.smem %s0, 6
  %s13 = sld [smem:[%s12]]
  %s14 = scalar_lea.smem %s0, 7
  %s15 = sld [smem:[%s14]]
  %s16 = scalar_lea.smem %s0, 8
  %s17 = sld [smem:[%s16]]
  %s18 = scalar_lea.smem %s0, 9
  %s19 = sld [smem:[%s18]]
  %s20 = scalar_lea.smem %s0, 10
  %s21 = sld [smem:[%s20]]
  %s22 = scalar_lea.smem %s0, 11
  %s23 = sld [smem:[%s22]]
  %s24 = scalar_lea.smem %s0, 12
  %s25 = sld [smem:[%s24]]
  %s26 = scalar_lea.smem %s0, 13
  %s27 = sld [smem:[%s26]]
  %s28 = scalar_lea.smem %s0, 14
  %s29 = sld [smem:[%s28]]
  %s30 = scalar_lea.smem %s0, 15
  %s31 = sld [smem:[%s30]]
  %s32 = scalar_lea.smem %s0, 16
  %s33 = sld [smem:[%s32]]
  %s34 = scalar_lea.smem %s0, 17
  %s35 = sld [smem:[%s34]]
  %s36 = scalar_lea.smem %s0, 18
  %s37 = sld [smem:[%s36]]
  %s38 = scalar_lea.smem %s0, 19
  %s39 = sld [smem:[%s38]]
  %s40 = scalar_lea.smem %s0, 20
  %s41 = sld [smem:[%s40]]
  %s42 = scalar_lea.smem %s0, 21
  %s43 = sld [smem:[%s42]]
  %s44 = scalar_lea.smem %s0, 22
  %s45 = sld [smem:[%s44]]
  %s46 = scalar_lea.smem %s0, 23
  %s47 = sld [smem:[%s46]]
  %s48 = scalar_lea.smem %s0, 24
  %s49 = sld [smem:[%s48]]
  %s50 = scalar_lea.smem %s0, 25
  %s51 = sld [smem:[%s50]]
  %s52 = scalar_lea.smem %s0, 26
  %s53 = sld [smem:[%s52]]
  %s54 = scalar_lea.smem %s0, 27
  %s55 = sld [smem:[%s54]]
  %s56 = scalar_lea.smem %s0, 28
  %s57 = sld [smem:[%s56]]
  %s58 = scalar_lea.smem %s0, 29
  %s59 = sld [smem:[%s58]]
  %s60 = scalar_lea.smem %s0, 30
  %s61 = sld [smem:[%s60]]
  %s62 = scalar_lea.smem %s0, 31
  %s63 = sld [smem:[%s62]]
  %s64 = scalar_lea.smem %s0, 32
  %s65 = sld [smem:[%s64]]
  %s66 = scalar_lea.smem %s0, 33
  %s67 = sld [smem:[%s66]]
  %s68 = scalar_lea.smem %s0, 34
  %s69 = sld [smem:[%s68]]
  %s70 = scalar_lea.smem %s0, 35
  %s71 = sld [smem:[%s70]]
  %s72 = scalar_lea.smem %s0, 36
  %s73 = sld [smem:[%s72]]
  %s74 = scalar_lea.smem %s0, 37
  %s75 = sld [smem:[%s74]]
  %s76 = sld [smem:[#allocation0]]
  $region242: #{autoencoder_forward.1} parent=0
    _
  %s78 = ssub.s32 1, %s76
  %s79 = scalar_select 0, %s78, %s76
  $region1: #{autoencoder_forward.1} parent=0
    #allocation2 [shape = 'u8[4096]{0}', space=vmem, size = 0x1000, scoped, tag = 'input window, operand 0, single buffered']
    #allocation3 [shape = 's32[1]{0}', space=sflag, size = 0x4, scoped, tag = 'scoped memory for autoencoder_forward.1']
    #allocation4 [shape = 'u8[4096]{0}', space=vmem, size = 0x1000, scoped, tag = 'input window, operand 1, single buffered']
    #allocation5 [shape = 's32[1]{0}', space=sflag, size = 0x4, scoped, tag = 'scoped memory for autoencoder_forward.1']
    #allocation6 [shape = 'u8[4096]{0}', space=vmem, size = 0x1000, scoped, tag = 'input window, operand 2, single buffered']
    #allocation7 [shape = 'u8[32768]{0}', space=vmem, size = 0x8000, scoped, tag = 'input window, operand 3, single buffered']
    #allocation8 [shape = 's32[1]{0}', space=sflag, size = 0x4, scoped, tag = 'scoped memory for autoencoder_forward.1']
    #allocation9 [shape = 'u8[65536]{0}', space=vmem, size = 0x10000, scoped, tag = 'input window, operand 5, single buffered']
    #allocation10 [shape = 'u8[28672]{0}', space=vmem, size = 0x7000, scoped, tag = 'input window, operand 7, single buffered']
    #allocation11 [shape = 's32[1]{0}', space=sflag, size = 0x4, scoped, tag = 'scoped memory for autoencoder_forward.1']
    #allocation12 [shape = 'u8[65536]{0}', space=vmem, size = 0x10000, scoped, tag = 'input window, operand 9, single buffered']
    #allocation13 [shape = 'u8[32768]{0}', space=vmem, size = 0x8000, scoped, tag = 'input window, operand 11, single buffered']
    #allocation14 [shape = 's32[1]{0}', space=sflag, size = 0x4, scoped, tag = 'scoped memory for autoencoder_forward.1']
    #allocation15 [shape = 'u8[65536]{0}', space=vmem, size = 0x10000, scoped, tag = 'input window, operand 13, single buffered']
    #allocation16 [shape = 'u8[65536]{0}', space=vmem, size = 0x10000, scoped, tag = 'input window, operand 15, single buffered']
    #allocation17 [shape = 's32[1]{0}', space=sflag, size = 0x4, scoped, tag = 'scoped memory for autoencoder_forward.1']
    #allocation18 [shape = 'u8[65536]{0}', space=vmem, size = 0x10000, scoped, tag = 'input window, operand 16, single buffered']
    #allocation19 [shape = 'u8[65536]{0}', space=vmem, size = 0x10000, scoped, tag = 'input window, operand 17, single buffered']
    #allocation20 [shape = 's32[1]{0}', space=sflag, size = 0x4, scoped, tag = 'scoped memory for autoencoder_forward.1']
    #allocation21 [shape = 'u8[65536]{0}', space=vmem, size = 0x10000, scoped, tag = 'input window, operand 19, single buffered']
    #allocation22 [shape = 'u8[65536]{0}', space=vmem, size = 0x10000, scoped, tag = 'input window, operand 21, single buffered']
    #allocation23 [shape = 's32[1]{0}', space=sflag, size = 0x4, scoped, tag = 'scoped memory for autoencoder_forward.1']
    #allocation24 [shape = 'u8[65536]{0}', space=vmem, size = 0x10000, scoped, tag = 'input window, operand 23, single buffered']
    #allocation25 [shape = 'u8[65536]{0}', space=vmem, size = 0x10000, scoped, tag = 'input window, operand 25, single buffered']
    #allocation26 [shape = 's32[1]{0}', space=sflag, size = 0x4, scoped, tag = 'scoped memory for autoencoder_forward.1']
    #allocation27 [shape = 'u8[65536]{0}', space=vmem, size = 0x10000, scoped, tag = 'input window, operand 27, single buffered']
    #allocation28 [shape = 'u8[65536]{0}', space=vmem, size = 0x10000, scoped, tag = 'input window, operand 29, single buffered']
    #allocation29 [shape = 's32[1]{0}', space=sflag, size = 0x4, scoped, tag = 'scoped memory for autoencoder_forward.1']
    #allocation30 [shape = 'u8[65536]{0}', space=vmem, size = 0x10000, scoped, tag = 'input window, operand 31, single buffered']
    #allocation31 [shape = 'u8[65536]{0}', space=vmem, size = 0x10000, scoped, tag = 'input window, operand 33, single buffered']
    #allocation32 [shape = 's32[1]{0}', space=sflag, size = 0x4, scoped, tag = 'scoped memory for autoencoder_forward.1']
    #allocation33 [shape = 'u8[65536]{0}', space=vmem, size = 0x10000, scoped, tag = 'input window, operand 35, single buffered']
    %80 = vsyncpa [#allocation3], 0
    %81 = vsyncpa [#allocation5], 0
    %82 = vsyncpa [#allocation8], 0
    %83 = vsyncpa [#allocation11], 0
    %84 = vsyncpa [#allocation14], 0
    %85 = vsyncpa [#allocation17], 0
    %86 = vsyncpa [#allocation20], 0
    %87 = vsyncpa [#allocation23], 0
    %88 = vsyncpa [#allocation26], 0
    %89 = vsyncpa [#allocation29], 0
    %90 = vsyncpa [#allocation32], 0
    // Predicated region
    $region2: #{autoencoder_forward.1} parent=1 // pred_check
      _
    $region3: #{autoencoder_forward.1} parent=1 // pred_check_branch
      %92 = sbr.rel (0) target = $region5
    $region4: #{autoencoder_forward.1} parent=1 // pred_region
      %s94 = ssub.s32 128, 128
      %95 = vsyncadd [#allocation3], %s94
      %s97 = sshll.u32 [#allocation2], 4
      %s98 = int_to_ptr.vmem [resolvable:$true] %s97
      %100 = dma.hbm_to_vmem [thread:$0]  %s1, 128, %s98, [#allocation3]
    $region5: #{autoencoder_forward.1} parent=1 // pred_fallthru
      _
    // Predicated region
    $region6: #{autoencoder_forward.1} parent=1 // pred_check
      _
    $region7: #{autoencoder_forward.1} parent=1 // pred_check_branch
      %102 = sbr.rel (0) target = $region9
    $region8: #{autoencoder_forward.1} parent=1 // pred_region
      %s104 = ssub.s32 128, 128
      %105 = vsyncadd [#allocation5], %s104
      %s107 = sshll.u32 [#allocation4], 4
      %s108 = int_to_ptr.vmem [resolvable:$true] %s107
      %110 = dma.hbm_to_vmem [thread:$0]  %s3, 128, %s108, [#allocation5]
    $region9: #{autoencoder_forward.1} parent=1 // pred_fallthru
      _
    // Predicated region
    $region10: #{autoencoder_forward.1} parent=1 // pred_check
      _
    $region11: #{autoencoder_forward.1} parent=1 // pred_check_branch
      %112 = sbr.rel (0) target = $region13
    $region12: #{autoencoder_forward.1} parent=1 // pred_region
      %s114 = ssub.s32 128, 128
      %115 = vsyncadd [#allocation5], %s114
      %s117 = sshll.u32 [#allocation6], 4
      %s118 = int_to_ptr.vmem [resolvable:$true] %s117
      %120 = dma.hbm_to_vmem [thread:$0]  %s5, 128, %s118, [#allocation5]
    $region13: #{autoencoder_forward.1} parent=1 // pred_fallthru
      _
    // Predicated region
    $region14: #{autoencoder_forward.1} parent=1 // pred_check
      _
    $region15: #{autoencoder_forward.1} parent=1 // pred_check_branch
      %122 = sbr.rel (0) target = $region17
    $region16: #{autoencoder_forward.1} parent=1 // pred_region
      %s124 = ssub.s32 1024, 1024
      %125 = vsyncadd [#allocation8], %s124
      %s126 = sshll.u32 [#allocation7], 4
      %s127 = int_to_ptr.vmem [resolvable:$true] %s126
      %132 = dma.hbm_to_vmem [thread:$0]  %s7, 1024, %s127, [#allocation8], 128, 128, 8
    $region17: #{autoencoder_forward.1} parent=1 // pred_fallthru
      _
    // Predicated region
    $region18: #{autoencoder_forward.1} parent=1 // pred_check
      _
    $region19: #{autoencoder_forward.1} parent=1 // pred_check_branch
      %134 = sbr.rel (0) target = $region21
    $region20: #{autoencoder_forward.1} parent=1 // pred_region
      _
    $region21: #{autoencoder_forward.1} parent=1 // pred_fallthru
      _
    // Predicated region
    $region22: #{autoencoder_forward.1} parent=1 // pred_check
      _
    $region23: #{autoencoder_forward.1} parent=1 // pred_check_branch
      %136 = sbr.rel (0) target = $region25
    $region24: #{autoencoder_forward.1} parent=1 // pred_region
      %s138 = ssub.s32 2048, 2048
      %139 = vsyncadd [#allocation8], %s138
      %s140 = sshll.u32 [#allocation9], 4
      %s141 = int_to_ptr.vmem [resolvable:$true] %s140
      %146 = dma.hbm_to_vmem [thread:$0]  %s11, 2048, %s141, [#allocation8], 128, 128, 8
    $region25: #{autoencoder_forward.1} parent=1 // pred_fallthru
      _
    // Predicated region
    $region26: #{autoencoder_forward.1} parent=1 // pred_check
      _
    $region27: #{autoencoder_forward.1} parent=1 // pred_check_branch
      %148 = sbr.rel (0) target = $region29
    $region28: #{autoencoder_forward.1} parent=1 // pred_region
      _
    $region29: #{autoencoder_forward.1} parent=1 // pred_fallthru
      _
    // Predicated region
    $region30: #{autoencoder_forward.1} parent=1 // pred_check
      _
    $region31: #{autoencoder_forward.1} parent=1 // pred_check_branch
      %150 = sbr.rel (0) target = $region33
    $region32: #{autoencoder_forward.1} parent=1 // pred_region
      %s152 = ssub.s32 896, 896
      %153 = vsyncadd [#allocation11], %s152
      %s154 = sshll.u32 [#allocation10], 4
      %s155 = int_to_ptr.vmem [resolvable:$true] %s154
      %160 = dma.hbm_to_vmem [thread:$0]  %s15, 896, %s155, [#allocation11], 128, 128, 8
    $region33: #{autoencoder_forward.1} parent=1 // pred_fallthru
      _
    // Predicated region
    $region34: #{autoencoder_forward.1} parent=1 // pred_check
      _
    $region35: #{autoencoder_forward.1} parent=1 // pred_check_branch
      %162 = sbr.rel (0) target = $region37
    $region36: #{autoencoder_forward.1} parent=1 // pred_region
      _
    $region37: #{autoencoder_forward.1} parent=1 // pred_fallthru
      _
    // Predicated region
    $region38: #{autoencoder_forward.1} parent=1 // pred_check
      _
    $region39: #{autoencoder_forward.1} parent=1 // pred_check_branch
      %164 = sbr.rel (0) target = $region41
    $region40: #{autoencoder_forward.1} parent=1 // pred_region
      %s166 = ssub.s32 2048, 2048
      %167 = vsyncadd [#allocation11], %s166
      %s168 = sshll.u32 [#allocation12], 4
      %s169 = int_to_ptr.vmem [resolvable:$true] %s168
      %174 = dma.hbm_to_vmem [thread:$0]  %s19, 2048, %s169, [#allocation11], 128, 128, 8
    $region41: #{autoencoder_forward.1} parent=1 // pred_fallthru
      _
    // Predicated region
    $region42: #{autoencoder_forward.1} parent=1 // pred_check
      _
    $region43: #{autoencoder_forward.1} parent=1 // pred_check_branch
      %176 = sbr.rel (0) target = $region45
    $region44: #{autoencoder_forward.1} parent=1 // pred_region
      _
    $region45: #{autoencoder_forward.1} parent=1 // pred_fallthru
      _
    // Predicated region
    $region46: #{autoencoder_forward.1} parent=1 // pred_check
      _
    $region47: #{autoencoder_forward.1} parent=1 // pred_check_branch
      %178 = sbr.rel (0) target = $region49
    $region48: #{autoencoder_forward.1} parent=1 // pred_region
      %s180 = ssub.s32 1024, 1024
      %181 = vsyncadd [#allocation14], %s180
      %s182 = sshll.u32 [#allocation13], 4
      %s183 = int_to_ptr.vmem [resolvable:$true] %s182
      %188 = dma.hbm_to_vmem [thread:$0]  %s23, 1024, %s183, [#allocation14], 128, 128, 8
    $region49: #{autoencoder_forward.1} parent=1 // pred_fallthru
      _
    // Predicated region
    $region50: #{autoencoder_forward.1} parent=1 // pred_check
      _
    $region51: #{autoencoder_forward.1} parent=1 // pred_check_branch
      %190 = sbr.rel (0) target = $region53
    $region52: #{autoencoder_forward.1} parent=1 // pred_region
      _
    $region53: #{autoencoder_forward.1} parent=1 // pred_fallthru
      _
    // Predicated region
    $region54: #{autoencoder_forward.1} parent=1 // pred_check
      _
    $region55: #{autoencoder_forward.1} parent=1 // pred_check_branch
      %192 = sbr.rel (0) target = $region57
    $region56: #{autoencoder_forward.1} parent=1 // pred_region
      %s194 = ssub.s32 2048, 2048
      %195 = vsyncadd [#allocation14], %s194
      %s196 = sshll.u32 [#allocation15], 4
      %s197 = int_to_ptr.vmem [resolvable:$true] %s196
      %202 = dma.hbm_to_vmem [thread:$0]  %s27, 2048, %s197, [#allocation14], 128, 128, 8
    $region57: #{autoencoder_forward.1} parent=1 // pred_fallthru
      _
    // Predicated region
    $region58: #{autoencoder_forward.1} parent=1 // pred_check
      _
    $region59: #{autoencoder_forward.1} parent=1 // pred_check_branch
      %204 = sbr.rel (0) target = $region61
    $region60: #{autoencoder_forward.1} parent=1 // pred_region
      _
    $region61: #{autoencoder_forward.1} parent=1 // pred_fallthru
      _
    // Predicated region
    $region62: #{autoencoder_forward.1} parent=1 // pred_check
      _
    $region63: #{autoencoder_forward.1} parent=1 // pred_check_branch
      %206 = sbr.rel (0) target = $region65
    $region64: #{autoencoder_forward.1} parent=1 // pred_region
      %s208 = ssub.s32 2048, 2048
      %209 = vsyncadd [#allocation17], %s208
      %s210 = sshll.u32 [#allocation16], 4
      %s211 = int_to_ptr.vmem [resolvable:$true] %s210
      %216 = dma.hbm_to_vmem [thread:$0]  %s31, 2048, %s211, [#allocation17], 128, 128, 8
    $region65: #{autoencoder_forward.1} parent=1 // pred_fallthru
      _
    // Predicated region
    $region66: #{autoencoder_forward.1} parent=1 // pred_check
      _
    $region67: #{autoencoder_forward.1} parent=1 // pred_check_branch
      %218 = sbr.rel (0) target = $region69
    $region68: #{autoencoder_forward.1} parent=1 // pred_region
      %s220 = ssub.s32 2048, 2048
      %221 = vsyncadd [#allocation17], %s220
      %s222 = sshll.u32 [#allocation18], 4
      %s223 = int_to_ptr.vmem [resolvable:$true] %s222
      %228 = dma.hbm_to_vmem [thread:$0]  %s33, 2048, %s223, [#allocation17], 128, 128, 8
    $region69: #{autoencoder_forward.1} parent=1 // pred_fallthru
      _
    // Predicated region
    $region70: #{autoencoder_forward.1} parent=1 // pred_check
      _
    $region71: #{autoencoder_forward.1} parent=1 // pred_check_branch
      %230 = sbr.rel (0) target = $region73
    $region72: #{autoencoder_forward.1} parent=1 // pred_region
      %s232 = ssub.s32 2048, 2048
      %233 = vsyncadd [#allocation20], %s232
      %s234 = sshll.u32 [#allocation19], 4
      %s235 = int_to_ptr.vmem [resolvable:$true] %s234
      %240 = dma.hbm_to_vmem [thread:$0]  %s35, 2048, %s235, [#allocation20], 128, 128, 8
    $region73: #{autoencoder_forward.1} parent=1 // pred_fallthru
      _
    // Predicated region
    $region74: #{autoencoder_forward.1} parent=1 // pred_check
      _
    $region75: #{autoencoder_forward.1} parent=1 // pred_check_branch
      %242 = sbr.rel (0) target = $region77
    $region76: #{autoencoder_forward.1} parent=1 // pred_region
      _
    $region77: #{autoencoder_forward.1} parent=1 // pred_fallthru
      _
    // Predicated region
    $region78: #{autoencoder_forward.1} parent=1 // pred_check
      _
    $region79: #{autoencoder_forward.1} parent=1 // pred_check_branch
      %244 = sbr.rel (0) target = $region81
    $region80: #{autoencoder_forward.1} parent=1 // pred_region
      %s246 = ssub.s32 2048, 2048
      %247 = vsyncadd [#allocation20], %s246
      %s248 = sshll.u32 [#allocation21], 4
      %s249 = int_to_ptr.vmem [resolvable:$true] %s248
      %254 = dma.hbm_to_vmem [thread:$0]  %s39, 2048, %s249, [#allocation20], 128, 128, 8
    $region81: #{autoencoder_forward.1} parent=1 // pred_fallthru
      _
    // Predicated region
    $region82: #{autoencoder_forward.1} parent=1 // pred_check
      _
    $region83: #{autoencoder_forward.1} parent=1 // pred_check_branch
      %256 = sbr.rel (0) target = $region85
    $region84: #{autoencoder_forward.1} parent=1 // pred_region
      _
    $region85: #{autoencoder_forward.1} parent=1 // pred_fallthru
      _
    // Predicated region
    $region86: #{autoencoder_forward.1} parent=1 // pred_check
      _
    $region87: #{autoencoder_forward.1} parent=1 // pred_check_branch
      %258 = sbr.rel (0) target = $region89
    $region88: #{autoencoder_forward.1} parent=1 // pred_region
      %s260 = ssub.s32 2048, 2048
      %261 = vsyncadd [#allocation23], %s260
      %s262 = sshll.u32 [#allocation22], 4
      %s263 = int_to_ptr.vmem [resolvable:$true] %s262
      %268 = dma.hbm_to_vmem [thread:$0]  %s43, 2048, %s263, [#allocation23], 128, 128, 8
    $region89: #{autoencoder_forward.1} parent=1 // pred_fallthru
      _
    // Predicated region
    $region90: #{autoencoder_forward.1} parent=1 // pred_check
      _
    $region91: #{autoencoder_forward.1} parent=1 // pred_check_branch
      %270 = sbr.rel (0) target = $region93
    $region92: #{autoencoder_forward.1} parent=1 // pred_region
      _
    $region93: #{autoencoder_forward.1} parent=1 // pred_fallthru
      _
    // Predicated region
    $region94: #{autoencoder_forward.1} parent=1 // pred_check
      _
    $region95: #{autoencoder_forward.1} parent=1 // pred_check_branch
      %272 = sbr.rel (0) target = $region97
    $region96: #{autoencoder_forward.1} parent=1 // pred_region
      %s274 = ssub.s32 2048, 2048
      %275 = vsyncadd [#allocation23], %s274
      %s276 = sshll.u32 [#allocation24], 4
      %s277 = int_to_ptr.vmem [resolvable:$true] %s276
      %282 = dma.hbm_to_vmem [thread:$0]  %s47, 2048, %s277, [#allocation23], 128, 128, 8
    $region97: #{autoencoder_forward.1} parent=1 // pred_fallthru
      _
    // Predicated region
    $region98: #{autoencoder_forward.1} parent=1 // pred_check
      _
    $region99: #{autoencoder_forward.1} parent=1 // pred_check_branch
      %284 = sbr.rel (0) target = $region101
    $region100: #{autoencoder_forward.1} parent=1 // pred_region
      _
    $region101: #{autoencoder_forward.1} parent=1 // pred_fallthru
      _
    // Predicated region
    $region102: #{autoencoder_forward.1} parent=1 // pred_check
      _
    $region103: #{autoencoder_forward.1} parent=1 // pred_check_branch
      %286 = sbr.rel (0) target = $region105
    $region104: #{autoencoder_forward.1} parent=1 // pred_region
      %s288 = ssub.s32 2048, 2048
      %289 = vsyncadd [#allocation26], %s288
      %s290 = sshll.u32 [#allocation25], 4
      %s291 = int_to_ptr.vmem [resolvable:$true] %s290
      %296 = dma.hbm_to_vmem [thread:$0]  %s51, 2048, %s291, [#allocation26], 128, 128, 8
    $region105: #{autoencoder_forward.1} parent=1 // pred_fallthru
      _
    // Predicated region
    $region106: #{autoencoder_forward.1} parent=1 // pred_check
      _
    $region107: #{autoencoder_forward.1} parent=1 // pred_check_branch
      %298 = sbr.rel (0) target = $region109
    $region108: #{autoencoder_forward.1} parent=1 // pred_region
      _
    $region109: #{autoencoder_forward.1} parent=1 // pred_fallthru
      _
    // Predicated region
    $region110: #{autoencoder_forward.1} parent=1 // pred_check
      _
    $region111: #{autoencoder_forward.1} parent=1 // pred_check_branch
      %300 = sbr.rel (0) target = $region113
    $region112: #{autoencoder_forward.1} parent=1 // pred_region
      %s302 = ssub.s32 2048, 2048
      %303 = vsyncadd [#allocation26], %s302
      %s304 = sshll.u32 [#allocation27], 4
      %s305 = int_to_ptr.vmem [resolvable:$true] %s304
      %310 = dma.hbm_to_vmem [thread:$0]  %s55, 2048, %s305, [#allocation26], 128, 128, 8
    $region113: #{autoencoder_forward.1} parent=1 // pred_fallthru
      _
    // Predicated region
    $region114: #{autoencoder_forward.1} parent=1 // pred_check
      _
    $region115: #{autoencoder_forward.1} parent=1 // pred_check_branch
      %312 = sbr.rel (0) target = $region117
    $region116: #{autoencoder_forward.1} parent=1 // pred_region
      _
    $region117: #{autoencoder_forward.1} parent=1 // pred_fallthru
      _
    // Predicated region
    $region118: #{autoencoder_forward.1} parent=1 // pred_check
      _
    $region119: #{autoencoder_forward.1} parent=1 // pred_check_branch
      %314 = sbr.rel (0) target = $region121
    $region120: #{autoencoder_forward.1} parent=1 // pred_region
      %s316 = ssub.s32 2048, 2048
      %317 = vsyncadd [#allocation29], %s316
      %s318 = sshll.u32 [#allocation28], 4
      %s319 = int_to_ptr.vmem [resolvable:$true] %s318
      %324 = dma.hbm_to_vmem [thread:$0]  %s59, 2048, %s319, [#allocation29], 128, 128, 8
    $region121: #{autoencoder_forward.1} parent=1 // pred_fallthru
      _
    // Predicated region
    $region122: #{autoencoder_forward.1} parent=1 // pred_check
      _
    $region123: #{autoencoder_forward.1} parent=1 // pred_check_branch
      %326 = sbr.rel (0) target = $region125
    $region124: #{autoencoder_forward.1} parent=1 // pred_region
      _
    $region125: #{autoencoder_forward.1} parent=1 // pred_fallthru
      _
    // Predicated region
    $region126: #{autoencoder_forward.1} parent=1 // pred_check
      _
    $region127: #{autoencoder_forward.1} parent=1 // pred_check_branch
      %328 = sbr.rel (0) target = $region129
    $region128: #{autoencoder_forward.1} parent=1 // pred_region
      %s330 = ssub.s32 2048, 2048
      %331 = vsyncadd [#allocation29], %s330
      %s332 = sshll.u32 [#allocation30], 4
      %s333 = int_to_ptr.vmem [resolvable:$true] %s332
      %338 = dma.hbm_to_vmem [thread:$0]  %s63, 2048, %s333, [#allocation29], 128, 128, 8
    $region129: #{autoencoder_forward.1} parent=1 // pred_fallthru
      _
    // Predicated region
    $region130: #{autoencoder_forward.1} parent=1 // pred_check
      _
    $region131: #{autoencoder_forward.1} parent=1 // pred_check_branch
      %340 = sbr.rel (0) target = $region133
    $region132: #{autoencoder_forward.1} parent=1 // pred_region
      _
    $region133: #{autoencoder_forward.1} parent=1 // pred_fallthru
      _
    // Predicated region
    $region134: #{autoencoder_forward.1} parent=1 // pred_check
      _
    $region135: #{autoencoder_forward.1} parent=1 // pred_check_branch
      %342 = sbr.rel (0) target = $region137
    $region136: #{autoencoder_forward.1} parent=1 // pred_region
      %s344 = ssub.s32 2048, 2048
      %345 = vsyncadd [#allocation32], %s344
      %s346 = sshll.u32 [#allocation31], 4
      %s347 = int_to_ptr.vmem [resolvable:$true] %s346
      %352 = dma.hbm_to_vmem [thread:$0]  %s67, 2048, %s347, [#allocation32], 128, 128, 8
    $region137: #{autoencoder_forward.1} parent=1 // pred_fallthru
      _
    // Predicated region
    $region138: #{autoencoder_forward.1} parent=1 // pred_check
      _
    $region139: #{autoencoder_forward.1} parent=1 // pred_check_branch
      %354 = sbr.rel (0) target = $region141
    $region140: #{autoencoder_forward.1} parent=1 // pred_region
      _
    $region141: #{autoencoder_forward.1} parent=1 // pred_fallthru
      _
    // Predicated region
    $region142: #{autoencoder_forward.1} parent=1 // pred_check
      _
    $region143: #{autoencoder_forward.1} parent=1 // pred_check_branch
      %356 = sbr.rel (0) target = $region145
    $region144: #{autoencoder_forward.1} parent=1 // pred_region
      %s358 = ssub.s32 2048, 2048
      %359 = vsyncadd [#allocation32], %s358
      %s360 = sshll.u32 [#allocation33], 4
      %s361 = int_to_ptr.vmem [resolvable:$true] %s360
      %366 = dma.hbm_to_vmem [thread:$0]  %s71, 2048, %s361, [#allocation32], 128, 128, 8
    $region145: #{autoencoder_forward.1} parent=1 // pred_fallthru
      _
    // Predicated region
    $region146: #{autoencoder_forward.1} parent=1 // pred_check
      _
    $region147: #{autoencoder_forward.1} parent=1 // pred_check_branch
      %368 = sbr.rel (0) target = $region149
    $region148: #{autoencoder_forward.1} parent=1 // pred_region
      _
    $region149: #{autoencoder_forward.1} parent=1 // pred_fallthru
      _
    // Predicated region
    $region150: #{autoencoder_forward.1} parent=1 // pred_check
      _
    $region151: #{autoencoder_forward.1} parent=1 // pred_check_branch
      %370 = sbr.rel (0) target = $region153
    $region152: #{autoencoder_forward.1} parent=1 // pred_region
      %371 = dma.done [#allocation3], 128
    $region153: #{autoencoder_forward.1} parent=1 // pred_fallthru
      _
    // Predicated region
    $region154: #{autoencoder_forward.1} parent=1 // pred_check
      _
    $region155: #{autoencoder_forward.1} parent=1 // pred_check_branch
      %373 = sbr.rel (0) target = $region157
    $region156: #{autoencoder_forward.1} parent=1 // pred_region
      %374 = dma.done [#allocation5], 128
    $region157: #{autoencoder_forward.1} parent=1 // pred_fallthru
      _
    // Predicated region
    $region158: #{autoencoder_forward.1} parent=1 // pred_check
      _
    $region159: #{autoencoder_forward.1} parent=1 // pred_check_branch
      %376 = sbr.rel (0) target = $region161
    $region160: #{autoencoder_forward.1} parent=1 // pred_region
      %377 = dma.done [#allocation5], 128
    $region161: #{autoencoder_forward.1} parent=1 // pred_fallthru
      _
    // Predicated region
    $region162: #{autoencoder_forward.1} parent=1 // pred_check
      _
    $region163: #{autoencoder_forward.1} parent=1 // pred_check_branch
      %379 = sbr.rel (0) target = $region165
    $region164: #{autoencoder_forward.1} parent=1 // pred_region
      %380 = dma.done [#allocation8], 1024
    $region165: #{autoencoder_forward.1} parent=1 // pred_fallthru
      _
    // Predicated region
    $region166: #{autoencoder_forward.1} parent=1 // pred_check
      _
    $region167: #{autoencoder_forward.1} parent=1 // pred_check_branch
      %382 = sbr.rel (0) target = $region169
    $region168: #{autoencoder_forward.1} parent=1 // pred_region
      %383 = dma.done [#allocation8], 2048
    $region169: #{autoencoder_forward.1} parent=1 // pred_fallthru
      _
    // Predicated region
    $region170: #{autoencoder_forward.1} parent=1 // pred_check
      _
    $region171: #{autoencoder_forward.1} parent=1 // pred_check_branch
      %385 = sbr.rel (0) target = $region173
    $region172: #{autoencoder_forward.1} parent=1 // pred_region
      %386 = dma.done [#allocation11], 896
    $region173: #{autoencoder_forward.1} parent=1 // pred_fallthru
      _
    // Predicated region
    $region174: #{autoencoder_forward.1} parent=1 // pred_check
      _
    $region175: #{autoencoder_forward.1} parent=1 // pred_check_branch
      %388 = sbr.rel (0) target = $region177
    $region176: #{autoencoder_forward.1} parent=1 // pred_region
      %389 = dma.done [#allocation11], 2048
    $region177: #{autoencoder_forward.1} parent=1 // pred_fallthru
      _
    // Predicated region
    $region178: #{autoencoder_forward.1} parent=1 // pred_check
      _
    $region179: #{autoencoder_forward.1} parent=1 // pred_check_branch
      %391 = sbr.rel (0) target = $region181
    $region180: #{autoencoder_forward.1} parent=1 // pred_region
      %392 = dma.done [#allocation14], 1024
    $region181: #{autoencoder_forward.1} parent=1 // pred_fallthru
      _
    // Predicated region
    $region182: #{autoencoder_forward.1} parent=1 // pred_check
      _
    $region183: #{autoencoder_forward.1} parent=1 // pred_check_branch
      %394 = sbr.rel (0) target = $region185
    $region184: #{autoencoder_forward.1} parent=1 // pred_region
      %395 = dma.done [#allocation14], 2048
    $region185: #{autoencoder_forward.1} parent=1 // pred_fallthru
      _
    // Predicated region
    $region186: #{autoencoder_forward.1} parent=1 // pred_check
      _
    $region187: #{autoencoder_forward.1} parent=1 // pred_check_branch
      %397 = sbr.rel (0) target = $region189
    $region188: #{autoencoder_forward.1} parent=1 // pred_region
      %398 = dma.done [#allocation17], 2048
    $region189: #{autoencoder_forward.1} parent=1 // pred_fallthru
      _
    // Predicated region
    $region190: #{autoencoder_forward.1} parent=1 // pred_check
      _
    $region191: #{autoencoder_forward.1} parent=1 // pred_check_branch
      %400 = sbr.rel (0) target = $region193
    $region192: #{autoencoder_forward.1} parent=1 // pred_region
      %401 = dma.done [#allocation17], 2048
    $region193: #{autoencoder_forward.1} parent=1 // pred_fallthru
      _
    // Predicated region
    $region194: #{autoencoder_forward.1} parent=1 // pred_check
      _
    $region195: #{autoencoder_forward.1} parent=1 // pred_check_branch
      %403 = sbr.rel (0) target = $region197
    $region196: #{autoencoder_forward.1} parent=1 // pred_region
      %404 = dma.done [#allocation20], 2048
    $region197: #{autoencoder_forward.1} parent=1 // pred_fallthru
      _
    // Predicated region
    $region198: #{autoencoder_forward.1} parent=1 // pred_check
      _
    $region199: #{autoencoder_forward.1} parent=1 // pred_check_branch
      %406 = sbr.rel (0) target = $region201
    $region200: #{autoencoder_forward.1} parent=1 // pred_region
      %407 = dma.done [#allocation20], 2048
    $region201: #{autoencoder_forward.1} parent=1 // pred_fallthru
      _
    // Predicated region
    $region202: #{autoencoder_forward.1} parent=1 // pred_check
      _
    $region203: #{autoencoder_forward.1} parent=1 // pred_check_branch
      %409 = sbr.rel (0) target = $region205
    $region204: #{autoencoder_forward.1} parent=1 // pred_region
      %410 = dma.done [#allocation23], 2048
    $region205: #{autoencoder_forward.1} parent=1 // pred_fallthru
      _
    // Predicated region
    $region206: #{autoencoder_forward.1} parent=1 // pred_check
      _
    $region207: #{autoencoder_forward.1} parent=1 // pred_check_branch
      %412 = sbr.rel (0) target = $region209
    $region208: #{autoencoder_forward.1} parent=1 // pred_region
      %413 = dma.done [#allocation23], 2048
    $region209: #{autoencoder_forward.1} parent=1 // pred_fallthru
      _
    // Predicated region
    $region210: #{autoencoder_forward.1} parent=1 // pred_check
      _
    $region211: #{autoencoder_forward.1} parent=1 // pred_check_branch
      %415 = sbr.rel (0) target = $region213
    $region212: #{autoencoder_forward.1} parent=1 // pred_region
      %416 = dma.done [#allocation26], 2048
    $region213: #{autoencoder_forward.1} parent=1 // pred_fallthru
      _
    // Predicated region
    $region214: #{autoencoder_forward.1} parent=1 // pred_check
      _
    $region215: #{autoencoder_forward.1} parent=1 // pred_check_branch
      %418 = sbr.rel (0) target = $region217
    $region216: #{autoencoder_forward.1} parent=1 // pred_region
      %419 = dma.done [#allocation26], 2048
    $region217: #{autoencoder_forward.1} parent=1 // pred_fallthru
      _
    // Predicated region
    $region218: #{autoencoder_forward.1} parent=1 // pred_check
      _
    $region219: #{autoencoder_forward.1} parent=1 // pred_check_branch
      %421 = sbr.rel (0) target = $region221
    $region220: #{autoencoder_forward.1} parent=1 // pred_region
      %422 = dma.done [#allocation29], 2048
    $region221: #{autoencoder_forward.1} parent=1 // pred_fallthru
      _
    // Predicated region
    $region222: #{autoencoder_forward.1} parent=1 // pred_check
      _
    $region223: #{autoencoder_forward.1} parent=1 // pred_check_branch
      %424 = sbr.rel (0) target = $region225
    $region224: #{autoencoder_forward.1} parent=1 // pred_region
      %425 = dma.done [#allocation29], 2048
    $region225: #{autoencoder_forward.1} parent=1 // pred_fallthru
      _
    // Predicated region
    $region226: #{autoencoder_forward.1} parent=1 // pred_check
      _
    $region227: #{autoencoder_forward.1} parent=1 // pred_check_branch
      %427 = sbr.rel (0) target = $region229
    $region228: #{autoencoder_forward.1} parent=1 // pred_region
      %428 = dma.done [#allocation32], 2048
    $region229: #{autoencoder_forward.1} parent=1 // pred_fallthru
      _
    // Predicated region
    $region230: #{autoencoder_forward.1} parent=1 // pred_check
      _
    $region231: #{autoencoder_forward.1} parent=1 // pred_check_branch
      %430 = sbr.rel (0) target = $region233
    $region232: #{autoencoder_forward.1} parent=1 // pred_region
      %431 = dma.done [#allocation32], 2048
    $region233: #{autoencoder_forward.1} parent=1 // pred_fallthru
      _
    %v432 = vld [vmem:[#allocation2] sm:$0xff]
    %v433 = vld [vmem:[#allocation7] sm:$0xff]
    %v434 = vld [vmem:[#allocation7 + $0x8] sm:$0xff]
    %v435 = vld [vmem:[#allocation7 + $0x10] sm:$0xff]
    %v436 = vld [vmem:[#allocation7 + $0x18] sm:$0xff]
    %v437 = vld [vmem:[#allocation7 + $0x20] sm:$0xff]
    %v438 = vld [vmem:[#allocation7 + $0x28] sm:$0xff]
    %v439 = vld [vmem:[#allocation7 + $0x30] sm:$0xff]
    %v440 = vld [vmem:[#allocation7 + $0x38] sm:$0xff]
    %v441 = vld [vmem:[%s9] sm:$0x1]
    %v443 = vlaneseq
    %v444 = vshrl.u32 %v443, 7
    %v445 = vsub.s32 0, %v444
    %v446 = vrot.slane %v441, %v445
    %vm448 = vcmask 523264
    %v450 = vsel %vm448, %v432, 0
    %452 = vmatprep.subr.mxu0 0.0
    %453 = vmatpush1.msra.mxu0 0.0
    %454 = vmatprep.subr.mxu0 0.0
    %455 = vmatpush1.msra.mxu0 0.0
    %456 = vmatprep.subr.mxu0 0.0
    %457 = vmatpush1.msra.mxu0 0.0
    %458 = vmatprep.subr.mxu0 0.0
    %459 = vmatpush1.msra.mxu0 0.0
    %460 = vmatprep.subr.mxu0 0.0
    %461 = vmatpush1.msra.mxu0 0.0
    %462 = vmatprep.subr.mxu0 0.0
    %463 = vmatpush1.msra.mxu0 0.0
    %464 = vmatprep.subr.mxu0 0.0
    %465 = vmatpush1.msra.mxu0 0.0
    %466 = vmatprep.subr.mxu0 0.0
    %467 = vmatpush1.msra.mxu0 0.0
    %468 = vmatprep.subr.mxu0 0.0
    %469 = vmatpush1.msra.mxu0 %v440
    %470 = vmatprep.subr.mxu0 0.0
    %471 = vmatpush1.msra.mxu0 %v439
    %472 = vmatprep.subr.mxu0 0.0
    %473 = vmatpush1.msra.mxu0 %v438
    %474 = vmatprep.subr.mxu0 0.0
    %475 = vmatpush1.msra.mxu0 %v437
    %476 = vmatprep.subr.mxu0 0.0
    %477 = vmatpush1.msra.mxu0 %v436
    %478 = vmatprep.subr.mxu0 0.0
    %479 = vmatpush1.msra.mxu0 %v435
    %480 = vmatprep.subr.mxu0 0.0
    %481 = vmatpush1.msra.mxu0 %v434
    %482 = vmatprep.subr.mxu0 0.0
    %483 = vmatpush1.msra.mxu0 %v433
    %484 = vmatprep.subr.mxu0 0.0
    %485 = vmatpush2.msra.mxu0 0.0
    %486 = vmatprep.subr.mxu0 0.0
    %487 = vmatpush2.msra.mxu0 0.0
    %488 = vmatprep.subr.mxu0 0.0
    %489 = vmatpush2.msra.mxu0 0.0
    %490 = vmatprep.subr.mxu0 0.0
    %491 = vmatpush2.msra.mxu0 0.0
    %492 = vmatprep.subr.mxu0 0.0
    %493 = vmatpush2.msra.mxu0 0.0
    %494 = vmatprep.subr.mxu0 0.0
    %495 = vmatpush2.msra.mxu0 0.0
    %496 = vmatprep.subr.mxu0 0.0
    %497 = vmatpush2.msra.mxu0 0.0
    %498 = vmatprep.subr.mxu0 0.0
    %499 = vmatpush2.msra.mxu0 0.0
    %500 = vmatprep.subr.mxu0 0.0
    %501 = vmatpush2.msra.mxu0 0.0
    %502 = vmatprep.subr.mxu0 0.0
    %503 = vmatpush2.msra.mxu0 0.0
    %504 = vmatprep.subr.mxu0 0.0
    %505 = vmatpush2.msra.mxu0 0.0
    %506 = vmatprep.subr.mxu0 0.0
    %507 = vmatpush2.msra.mxu0 0.0
    %508 = vmatprep.subr.mxu0 0.0
    %509 = vmatpush2.msra.mxu0 0.0
    %510 = vmatprep.subr.mxu0 0.0
    %511 = vmatpush2.msra.mxu0 0.0
    %512 = vmatprep.subr.mxu0 0.0
    %513 = vmatpush2.msra.mxu0 0.0
    %514 = vmatprep.subr.mxu0 0.0
    %515 = vmatpush2.msra.mxu0 0.0
    %516 = vmatprep.mubr.f32.mxu0 0.0
    %517 = vmatmul.mubr.f32.gmra.mxu0 %v450
    %v518 = vpop.f32.mrf.mxu0
    %v519 = vadd.f32 %v446, %v518
    %v520 = vpop.f32.mrf.mxu0
    %521 = vdwg.mxu0
    %v522 = vtanh.pop %v519
    %v523 = vld [vmem:[#allocation9] sm:$0xff]
    %v524 = vld [vmem:[#allocation9 + $0x8] sm:$0xff]
    %v525 = vld [vmem:[#allocation9 + $0x10] sm:$0xff]
    %v526 = vld [vmem:[#allocation9 + $0x18] sm:$0xff]
    %v527 = vld [vmem:[#allocation9 + $0x20] sm:$0xff]
    %v528 = vld [vmem:[#allocation9 + $0x28] sm:$0xff]
    %v529 = vld [vmem:[#allocation9 + $0x30] sm:$0xff]
    %v530 = vld [vmem:[#allocation9 + $0x38] sm:$0xff]
    %v531 = vld [vmem:[#allocation9 + $0x40] sm:$0xff]
    %v532 = vld [vmem:[#allocation9 + $0x48] sm:$0xff]
    %v533 = vld [vmem:[#allocation9 + $0x50] sm:$0xff]
    %v534 = vld [vmem:[#allocation9 + $0x58] sm:$0xff]
    %v535 = vld [vmem:[#allocation9 + $0x60] sm:$0xff]
    %v536 = vld [vmem:[#allocation9 + $0x68] sm:$0xff]
    %v537 = vld [vmem:[#allocation9 + $0x70] sm:$0xff]
    %v538 = vld [vmem:[#allocation9 + $0x78] sm:$0xff]
    %v539 = vld [vmem:[%s13] sm:$0x1]
    %v541 = vlaneseq
    %v542 = vshrl.u32 %v541, 7
    %v543 = vsub.s32 0, %v542
    %v544 = vrot.slane %v539, %v543
    %546 = vmatprep.subr.mxu0 0.0
    %547 = vmatpush1.msra.mxu0 %v538
    %548 = vmatprep.subr.mxu0 0.0
    %549 = vmatpush1.msra.mxu0 %v537
    %550 = vmatprep.subr.mxu0 0.0
    %551 = vmatpush1.msra.mxu0 %v536
    %552 = vmatprep.subr.mxu0 0.0
    %553 = vmatpush1.msra.mxu0 %v535
    %554 = vmatprep.subr.mxu0 0.0
    %555 = vmatpush1.msra.mxu0 %v534
    %556 = vmatprep.subr.mxu0 0.0
    %557 = vmatpush1.msra.mxu0 %v533
    %558 = vmatprep.subr.mxu0 0.0
    %559 = vmatpush1.msra.mxu0 %v532
    %560 = vmatprep.subr.mxu0 0.0
    %561 = vmatpush1.msra.mxu0 %v531
    %562 = vmatprep.subr.mxu0 0.0
    %563 = vmatpush1.msra.mxu0 %v530
    %564 = vmatprep.subr.mxu0 0.0
    %565 = vmatpush1.msra.mxu0 %v529
    %566 = vmatprep.subr.mxu0 0.0
    %567 = vmatpush1.msra.mxu0 %v528
    %568 = vmatprep.subr.mxu0 0.0
    %569 = vmatpush1.msra.mxu0 %v527
    %570 = vmatprep.subr.mxu0 0.0
    %571 = vmatpush1.msra.mxu0 %v526
    %572 = vmatprep.subr.mxu0 0.0
    %573 = vmatpush1.msra.mxu0 %v525
    %574 = vmatprep.subr.mxu0 0.0
    %575 = vmatpush1.msra.mxu0 %v524
    %576 = vmatprep.subr.mxu0 0.0
    %577 = vmatpush1.msra.mxu0 %v523
    %578 = vmatprep.subr.mxu0 0.0
    %579 = vmatpush2.msra.mxu0 0.0
    %580 = vmatprep.subr.mxu0 0.0
    %581 = vmatpush2.msra.mxu0 0.0
    %582 = vmatprep.subr.mxu0 0.0
    %583 = vmatpush2.msra.mxu0 0.0
    %584 = vmatprep.subr.mxu0 0.0
    %585 = vmatpush2.msra.mxu0 0.0
    %586 = vmatprep.subr.mxu0 0.0
    %587 = vmatpush2.msra.mxu0 0.0
    %588 = vmatprep.subr.mxu0 0.0
    %589 = vmatpush2.msra.mxu0 0.0
    %590 = vmatprep.subr.mxu0 0.0
    %591 = vmatpush2.msra.mxu0 0.0
    %592 = vmatprep.subr.mxu0 0.0
    %593 = vmatpush2.msra.mxu0 0.0
    %594 = vmatprep.subr.mxu0 0.0
    %595 = vmatpush2.msra.mxu0 0.0
    %596 = vmatprep.subr.mxu0 0.0
    %597 = vmatpush2.msra.mxu0 0.0
    %598 = vmatprep.subr.mxu0 0.0
    %599 = vmatpush2.msra.mxu0 0.0
    %600 = vmatprep.subr.mxu0 0.0
    %601 = vmatpush2.msra.mxu0 0.0
    %602 = vmatprep.subr.mxu0 0.0
    %603 = vmatpush2.msra.mxu0 0.0
    %604 = vmatprep.subr.mxu0 0.0
    %605 = vmatpush2.msra.mxu0 0.0
    %606 = vmatprep.subr.mxu0 0.0
    %607 = vmatpush2.msra.mxu0 0.0
    %608 = vmatprep.subr.mxu0 0.0
    %609 = vmatpush2.msra.mxu0 0.0
    %610 = vmatprep.mubr.f32.mxu0 0.0
    %611 = vmatmul.mubr.f32.gmra.mxu0 %v522
    %v612 = vpop.f32.mrf.mxu0
    %v613 = vadd.f32 %v544, %v612
    %v614 = vpop.f32.mrf.mxu0
    %615 = vdwg.mxu0
    %v616 = vtanh.pop %v613
    %v617 = vld [vmem:[#allocation4] sm:$0xff]
    %v618 = vld [vmem:[#allocation10] sm:$0xff]
    %v619 = vld [vmem:[#allocation10 + $0x8] sm:$0xff]
    %v620 = vld [vmem:[#allocation10 + $0x10] sm:$0xff]
    %v621 = vld [vmem:[#allocation10 + $0x18] sm:$0xff]
    %v622 = vld [vmem:[#allocation10 + $0x20] sm:$0xff]
    %v623 = vld [vmem:[#allocation10 + $0x28] sm:$0xff]
    %v624 = vld [vmem:[#allocation10 + $0x30] sm:$0xff]
    %v625 = vld [vmem:[%s17] sm:$0x1]
    %v627 = vlaneseq
    %v628 = vshrl.u32 %v627, 7
    %v629 = vsub.s32 0, %v628
    %v630 = vrot.slane %v625, %v629
    %vm632 = vcmask 457728
    %v634 = vsel %vm632, %v617, 0
    %636 = vmatprep.subr.mxu0 0.0
    %637 = vmatpush1.msra.mxu0 0.0
    %638 = vmatprep.subr.mxu0 0.0
    %639 = vmatpush1.msra.mxu0 0.0
    %640 = vmatprep.subr.mxu0 0.0
    %641 = vmatpush1.msra.mxu0 0.0
    %642 = vmatprep.subr.mxu0 0.0
    %643 = vmatpush1.msra.mxu0 0.0
    %644 = vmatprep.subr.mxu0 0.0
    %645 = vmatpush1.msra.mxu0 0.0
    %646 = vmatprep.subr.mxu0 0.0
    %647 = vmatpush1.msra.mxu0 0.0
    %648 = vmatprep.subr.mxu0 0.0
    %649 = vmatpush1.msra.mxu0 0.0
    %650 = vmatprep.subr.mxu0 0.0
    %651 = vmatpush1.msra.mxu0 0.0
    %652 = vmatprep.subr.mxu0 0.0
    %653 = vmatpush1.msra.mxu0 0.0
    %654 = vmatprep.subr.mxu0 0.0
    %655 = vmatpush1.msra.mxu0 %v624
    %656 = vmatprep.subr.mxu0 0.0
    %657 = vmatpush1.msra.mxu0 %v623
    %658 = vmatprep.subr.mxu0 0.0
    %659 = vmatpush1.msra.mxu0 %v622
    %660 = vmatprep.subr.mxu0 0.0
    %661 = vmatpush1.msra.mxu0 %v621
    %662 = vmatprep.subr.mxu0 0.0
    %663 = vmatpush1.msra.mxu0 %v620
    %664 = vmatprep.subr.mxu0 0.0
    %665 = vmatpush1.msra.mxu0 %v619
    %666 = vmatprep.subr.mxu0 0.0
    %667 = vmatpush1.msra.mxu0 %v618
    %668 = vmatprep.subr.mxu0 0.0
    %669 = vmatpush2.msra.mxu0 0.0
    %670 = vmatprep.subr.mxu0 0.0
    %671 = vmatpush2.msra.mxu0 0.0
    %672 = vmatprep.subr.mxu0 0.0
    %673 = vmatpush2.msra.mxu0 0.0
    %674 = vmatprep.subr.mxu0 0.0
    %675 = vmatpush2.msra.mxu0 0.0
    %676 = vmatprep.subr.mxu0 0.0
    %677 = vmatpush2.msra.mxu0 0.0
    %678 = vmatprep.subr.mxu0 0.0
    %679 = vmatpush2.msra.mxu0 0.0
    %680 = vmatprep.subr.mxu0 0.0
    %681 = vmatpush2.msra.mxu0 0.0
    %682 = vmatprep.subr.mxu0 0.0
    %683 = vmatpush2.msra.mxu0 0.0
    %684 = vmatprep.subr.mxu0 0.0
    %685 = vmatpush2.msra.mxu0 0.0
    %686 = vmatprep.subr.mxu0 0.0
    %687 = vmatpush2.msra.mxu0 0.0
    %688 = vmatprep.subr.mxu0 0.0
    %689 = vmatpush2.msra.mxu0 0.0
    %690 = vmatprep.subr.mxu0 0.0
    %691 = vmatpush2.msra.mxu0 0.0
    %692 = vmatprep.subr.mxu0 0.0
    %693 = vmatpush2.msra.mxu0 0.0
    %694 = vmatprep.subr.mxu0 0.0
    %695 = vmatpush2.msra.mxu0 0.0
    %696 = vmatprep.subr.mxu0 0.0
    %697 = vmatpush2.msra.mxu0 0.0
    %698 = vmatprep.subr.mxu0 0.0
    %699 = vmatpush2.msra.mxu0 0.0
    %700 = vmatprep.mubr.f32.mxu0 0.0
    %701 = vmatmul.mubr.f32.gmra.mxu0 %v634
    %v702 = vpop.f32.mrf.mxu0
    %v703 = vadd.f32 %v630, %v702
    %v704 = vpop.f32.mrf.mxu0
    %705 = vdwg.mxu0
    %v706 = vtanh.pop %v703
    %v707 = vld [vmem:[#allocation12] sm:$0xff]
    %v708 = vld [vmem:[#allocation12 + $0x8] sm:$0xff]
    %v709 = vld [vmem:[#allocation12 + $0x10] sm:$0xff]
    %v710 = vld [vmem:[#allocation12 + $0x18] sm:$0xff]
    %v711 = vld [vmem:[#allocation12 + $0x20] sm:$0xff]
    %v712 = vld [vmem:[#allocation12 + $0x28] sm:$0xff]
    %v713 = vld [vmem:[#allocation12 + $0x30] sm:$0xff]
    %v714 = vld [vmem:[#allocation12 + $0x38] sm:$0xff]
    %v715 = vld [vmem:[#allocation12 + $0x40] sm:$0xff]
    %v716 = vld [vmem:[#allocation12 + $0x48] sm:$0xff]
    %v717 = vld [vmem:[#allocation12 + $0x50] sm:$0xff]
    %v718 = vld [vmem:[#allocation12 + $0x58] sm:$0xff]
    %v719 = vld [vmem:[#allocation12 + $0x60] sm:$0xff]
    %v720 = vld [vmem:[#allocation12 + $0x68] sm:$0xff]
    %v721 = vld [vmem:[#allocation12 + $0x70] sm:$0xff]
    %v722 = vld [vmem:[#allocation12 + $0x78] sm:$0xff]
    %v723 = vld [vmem:[%s21] sm:$0x1]
    %v725 = vlaneseq
    %v726 = vshrl.u32 %v725, 7
    %v727 = vsub.s32 0, %v726
    %v728 = vrot.slane %v723, %v727
    %730 = vmatprep.subr.mxu0 0.0
    %731 = vmatpush1.msra.mxu0 %v722
    %732 = vmatprep.subr.mxu0 0.0
    %733 = vmatpush1.msra.mxu0 %v721
    %734 = vmatprep.subr.mxu0 0.0
    %735 = vmatpush1.msra.mxu0 %v720
    %736 = vmatprep.subr.mxu0 0.0
    %737 = vmatpush1.msra.mxu0 %v719
    %738 = vmatprep.subr.mxu0 0.0
    %739 = vmatpush1.msra.mxu0 %v718
    %740 = vmatprep.subr.mxu0 0.0
    %741 = vmatpush1.msra.mxu0 %v717
    %742 = vmatprep.subr.mxu0 0.0
    %743 = vmatpush1.msra.mxu0 %v716
    %744 = vmatprep.subr.mxu0 0.0
    %745 = vmatpush1.msra.mxu0 %v715
    %746 = vmatprep.subr.mxu0 0.0
    %747 = vmatpush1.msra.mxu0 %v714
    %748 = vmatprep.subr.mxu0 0.0
    %749 = vmatpush1.msra.mxu0 %v713
    %750 = vmatprep.subr.mxu0 0.0
    %751 = vmatpush1.msra.mxu0 %v712
    %752 = vmatprep.subr.mxu0 0.0
    %753 = vmatpush1.msra.mxu0 %v711
    %754 = vmatprep.subr.mxu0 0.0
    %755 = vmatpush1.msra.mxu0 %v710
    %756 = vmatprep.subr.mxu0 0.0
    %757 = vmatpush1.msra.mxu0 %v709
    %758 = vmatprep.subr.mxu0 0.0
    %759 = vmatpush1.msra.mxu0 %v708
    %760 = vmatprep.subr.mxu0 0.0
    %761 = vmatpush1.msra.mxu0 %v707
    %762 = vmatprep.subr.mxu0 0.0
    %763 = vmatpush2.msra.mxu0 0.0
    %764 = vmatprep.subr.mxu0 0.0
    %765 = vmatpush2.msra.mxu0 0.0
    %766 = vmatprep.subr.mxu0 0.0
    %767 = vmatpush2.msra.mxu0 0.0
    %768 = vmatprep.subr.mxu0 0.0
    %769 = vmatpush2.msra.mxu0 0.0
    %770 = vmatprep.subr.mxu0 0.0
    %771 = vmatpush2.msra.mxu0 0.0
    %772 = vmatprep.subr.mxu0 0.0
    %773 = vmatpush2.msra.mxu0 0.0
    %774 = vmatprep.subr.mxu0 0.0
    %775 = vmatpush2.msra.mxu0 0.0
    %776 = vmatprep.subr.mxu0 0.0
    %777 = vmatpush2.msra.mxu0 0.0
    %778 = vmatprep.subr.mxu0 0.0
    %779 = vmatpush2.msra.mxu0 0.0
    %780 = vmatprep.subr.mxu0 0.0
    %781 = vmatpush2.msra.mxu0 0.0
    %782 = vmatprep.subr.mxu0 0.0
    %783 = vmatpush2.msra.mxu0 0.0
    %784 = vmatprep.subr.mxu0 0.0
    %785 = vmatpush2.msra.mxu0 0.0
    %786 = vmatprep.subr.mxu0 0.0
    %787 = vmatpush2.msra.mxu0 0.0
    %788 = vmatprep.subr.mxu0 0.0
    %789 = vmatpush2.msra.mxu0 0.0
    %790 = vmatprep.subr.mxu0 0.0
    %791 = vmatpush2.msra.mxu0 0.0
    %792 = vmatprep.subr.mxu0 0.0
    %793 = vmatpush2.msra.mxu0 0.0
    %794 = vmatprep.mubr.f32.mxu0 0.0
    %795 = vmatmul.mubr.f32.gmra.mxu0 %v706
    %v796 = vpop.f32.mrf.mxu0
    %v797 = vadd.f32 %v728, %v796
    %v798 = vpop.f32.mrf.mxu0
    %799 = vdwg.mxu0
    %v800 = vtanh.pop %v797
    %v801 = vld [vmem:[#allocation6] sm:$0xff]
    %v802 = vld [vmem:[#allocation13] sm:$0xff]
    %v803 = vld [vmem:[#allocation13 + $0x8] sm:$0xff]
    %v804 = vld [vmem:[#allocation13 + $0x10] sm:$0xff]
    %v805 = vld [vmem:[#allocation13 + $0x18] sm:$0xff]
    %v806 = vld [vmem:[#allocation13 + $0x20] sm:$0xff]
    %v807 = vld [vmem:[#allocation13 + $0x28] sm:$0xff]
    %v808 = vld [vmem:[#allocation13 + $0x30] sm:$0xff]
    %v809 = vld [vmem:[#allocation13 + $0x38] sm:$0xff]
    %v810 = vld [vmem:[%s25] sm:$0x1]
    %v812 = vlaneseq
    %v813 = vshrl.u32 %v812, 7
    %v814 = vsub.s32 0, %v813
    %v815 = vrot.slane %v810, %v814
    %v818 = vsel %vm448, %v801, 0
    %820 = vmatprep.subr.mxu0 0.0
    %821 = vmatpush1.msra.mxu0 0.0
    %822 = vmatprep.subr.mxu0 0.0
    %823 = vmatpush1.msra.mxu0 0.0
    %824 = vmatprep.subr.mxu0 0.0
    %825 = vmatpush1.msra.mxu0 0.0
    %826 = vmatprep.subr.mxu0 0.0
    %827 = vmatpush1.msra.mxu0 0.0
    %828 = vmatprep.subr.mxu0 0.0
    %829 = vmatpush1.msra.mxu0 0.0
    %830 = vmatprep.subr.mxu0 0.0
    %831 = vmatpush1.msra.mxu0 0.0
    %832 = vmatprep.subr.mxu0 0.0
    %833 = vmatpush1.msra.mxu0 0.0
    %834 = vmatprep.subr.mxu0 0.0
    %835 = vmatpush1.msra.mxu0 0.0
    %836 = vmatprep.subr.mxu0 0.0
    %837 = vmatpush1.msra.mxu0 %v809
    %838 = vmatprep.subr.mxu0 0.0
    %839 = vmatpush1.msra.mxu0 %v808
    %840 = vmatprep.subr.mxu0 0.0
    %841 = vmatpush1.msra.mxu0 %v807
    %842 = vmatprep.subr.mxu0 0.0
    %843 = vmatpush1.msra.mxu0 %v806
    %844 = vmatprep.subr.mxu0 0.0
    %845 = vmatpush1.msra.mxu0 %v805
    %846 = vmatprep.subr.mxu0 0.0
    %847 = vmatpush1.msra.mxu0 %v804
    %848 = vmatprep.subr.mxu0 0.0
    %849 = vmatpush1.msra.mxu0 %v803
    %850 = vmatprep.subr.mxu0 0.0
    %851 = vmatpush1.msra.mxu0 %v802
    %852 = vmatprep.subr.mxu0 0.0
    %853 = vmatpush2.msra.mxu0 0.0
    %854 = vmatprep.subr.mxu0 0.0
    %855 = vmatpush2.msra.mxu0 0.0
    %856 = vmatprep.subr.mxu0 0.0
    %857 = vmatpush2.msra.mxu0 0.0
    %858 = vmatprep.subr.mxu0 0.0
    %859 = vmatpush2.msra.mxu0 0.0
    %860 = vmatprep.subr.mxu0 0.0
    %861 = vmatpush2.msra.mxu0 0.0
    %862 = vmatprep.subr.mxu0 0.0
    %863 = vmatpush2.msra.mxu0 0.0
    %864 = vmatprep.subr.mxu0 0.0
    %865 = vmatpush2.msra.mxu0 0.0
    %866 = vmatprep.subr.mxu0 0.0
    %867 = vmatpush2.msra.mxu0 0.0
    %868 = vmatprep.subr.mxu0 0.0
    %869 = vmatpush2.msra.mxu0 0.0
    %870 = vmatprep.subr.mxu0 0.0
    %871 = vmatpush2.msra.mxu0 0.0
    %872 = vmatprep.subr.mxu0 0.0
    %873 = vmatpush2.msra.mxu0 0.0
    %874 = vmatprep.subr.mxu0 0.0
    %875 = vmatpush2.msra.mxu0 0.0
    %876 = vmatprep.subr.mxu0 0.0
    %877 = vmatpush2.msra.mxu0 0.0
    %878 = vmatprep.subr.mxu0 0.0
    %879 = vmatpush2.msra.mxu0 0.0
    %880 = vmatprep.subr.mxu0 0.0
    %881 = vmatpush2.msra.mxu0 0.0
    %882 = vmatprep.subr.mxu0 0.0
    %883 = vmatpush2.msra.mxu0 0.0
    %884 = vmatprep.mubr.f32.mxu0 0.0
    %885 = vmatmul.mubr.f32.gmra.mxu0 %v818
    %v886 = vpop.f32.mrf.mxu0
    %v887 = vadd.f32 %v815, %v886
    %v888 = vpop.f32.mrf.mxu0
    %889 = vdwg.mxu0
    %v890 = vtanh.pop %v887
    %v891 = vld [vmem:[#allocation15] sm:$0xff]
    %v892 = vld [vmem:[#allocation15 + $0x8] sm:$0xff]
    %v893 = vld [vmem:[#allocation15 + $0x10] sm:$0xff]
    %v894 = vld [vmem:[#allocation15 + $0x18] sm:$0xff]
    %v895 = vld [vmem:[#allocation15 + $0x20] sm:$0xff]
    %v896 = vld [vmem:[#allocation15 + $0x28] sm:$0xff]
    %v897 = vld [vmem:[#allocation15 + $0x30] sm:$0xff]
    %v898 = vld [vmem:[#allocation15 + $0x38] sm:$0xff]
    %v899 = vld [vmem:[#allocation15 + $0x40] sm:$0xff]
    %v900 = vld [vmem:[#allocation15 + $0x48] sm:$0xff]
    %v901 = vld [vmem:[#allocation15 + $0x50] sm:$0xff]
    %v902 = vld [vmem:[#allocation15 + $0x58] sm:$0xff]
    %v903 = vld [vmem:[#allocation15 + $0x60] sm:$0xff]
    %v904 = vld [vmem:[#allocation15 + $0x68] sm:$0xff]
    %v905 = vld [vmem:[#allocation15 + $0x70] sm:$0xff]
    %v906 = vld [vmem:[#allocation15 + $0x78] sm:$0xff]
    %v907 = vld [vmem:[%s29] sm:$0x1]
    %v909 = vlaneseq
    %v910 = vshrl.u32 %v909, 7
    %v911 = vsub.s32 0, %v910
    %v912 = vrot.slane %v907, %v911
    %914 = vmatprep.subr.mxu0 0.0
    %915 = vmatpush1.msra.mxu0 %v906
    %916 = vmatprep.subr.mxu0 0.0
    %917 = vmatpush1.msra.mxu0 %v905
    %918 = vmatprep.subr.mxu0 0.0
    %919 = vmatpush1.msra.mxu0 %v904
    %920 = vmatprep.subr.mxu0 0.0
    %921 = vmatpush1.msra.mxu0 %v903
    %922 = vmatprep.subr.mxu0 0.0
    %923 = vmatpush1.msra.mxu0 %v902
    %924 = vmatprep.subr.mxu0 0.0
    %925 = vmatpush1.msra.mxu0 %v901
    %926 = vmatprep.subr.mxu0 0.0
    %927 = vmatpush1.msra.mxu0 %v900
    %928 = vmatprep.subr.mxu0 0.0
    %929 = vmatpush1.msra.mxu0 %v899
    %930 = vmatprep.subr.mxu0 0.0
    %931 = vmatpush1.msra.mxu0 %v898
    %932 = vmatprep.subr.mxu0 0.0
    %933 = vmatpush1.msra.mxu0 %v897
    %934 = vmatprep.subr.mxu0 0.0
    %935 = vmatpush1.msra.mxu0 %v896
    %936 = vmatprep.subr.mxu0 0.0
    %937 = vmatpush1.msra.mxu0 %v895
    %938 = vmatprep.subr.mxu0 0.0
    %939 = vmatpush1.msra.mxu0 %v894
    %940 = vmatprep.subr.mxu0 0.0
    %941 = vmatpush1.msra.mxu0 %v893
    %942 = vmatprep.subr.mxu0 0.0
    %943 = vmatpush1.msra.mxu0 %v892
    %944 = vmatprep.subr.mxu0 0.0
    %945 = vmatpush1.msra.mxu0 %v891
    %946 = vmatprep.subr.mxu0 0.0
    %947 = vmatpush2.msra.mxu0 0.0
    %948 = vmatprep.subr.mxu0 0.0
    %949 = vmatpush2.msra.mxu0 0.0
    %950 = vmatprep.subr.mxu0 0.0
    %951 = vmatpush2.msra.mxu0 0.0
    %952 = vmatprep.subr.mxu0 0.0
    %953 = vmatpush2.msra.mxu0 0.0
    %954 = vmatprep.subr.mxu0 0.0
    %955 = vmatpush2.msra.mxu0 0.0
    %956 = vmatprep.subr.mxu0 0.0
    %957 = vmatpush2.msra.mxu0 0.0
    %958 = vmatprep.subr.mxu0 0.0
    %959 = vmatpush2.msra.mxu0 0.0
    %960 = vmatprep.subr.mxu0 0.0
    %961 = vmatpush2.msra.mxu0 0.0
    %962 = vmatprep.subr.mxu0 0.0
    %963 = vmatpush2.msra.mxu0 0.0
    %964 = vmatprep.subr.mxu0 0.0
    %965 = vmatpush2.msra.mxu0 0.0
    %966 = vmatprep.subr.mxu0 0.0
    %967 = vmatpush2.msra.mxu0 0.0
    %968 = vmatprep.subr.mxu0 0.0
    %969 = vmatpush2.msra.mxu0 0.0
    %970 = vmatprep.subr.mxu0 0.0
    %971 = vmatpush2.msra.mxu0 0.0
    %972 = vmatprep.subr.mxu0 0.0
    %973 = vmatpush2.msra.mxu0 0.0
    %974 = vmatprep.subr.mxu0 0.0
    %975 = vmatpush2.msra.mxu0 0.0
    %976 = vmatprep.subr.mxu0 0.0
    %977 = vmatpush2.msra.mxu0 0.0
    %978 = vmatprep.mubr.f32.mxu0 0.0
    %979 = vmatmul.mubr.f32.gmra.mxu0 %v890
    %v980 = vpop.f32.mrf.mxu0
    %v981 = vadd.f32 %v912, %v980
    %v982 = vpop.f32.mrf.mxu0
    %983 = vdwg.mxu0
    %v984 = vtanh.pop %v981
    %v985 = vld [vmem:[#allocation16] sm:$0xff]
    %v986 = vld [vmem:[#allocation16 + $0x8] sm:$0xff]
    %v987 = vld [vmem:[#allocation16 + $0x10] sm:$0xff]
    %v988 = vld [vmem:[#allocation16 + $0x18] sm:$0xff]
    %v989 = vld [vmem:[#allocation16 + $0x20] sm:$0xff]
    %v990 = vld [vmem:[#allocation16 + $0x28] sm:$0xff]
    %v991 = vld [vmem:[#allocation16 + $0x30] sm:$0xff]
    %v992 = vld [vmem:[#allocation16 + $0x38] sm:$0xff]
    %v993 = vld [vmem:[#allocation16 + $0x40] sm:$0xff]
    %v994 = vld [vmem:[#allocation16 + $0x48] sm:$0xff]
    %v995 = vld [vmem:[#allocation16 + $0x50] sm:$0xff]
    %v996 = vld [vmem:[#allocation16 + $0x58] sm:$0xff]
    %v997 = vld [vmem:[#allocation16 + $0x60] sm:$0xff]
    %v998 = vld [vmem:[#allocation16 + $0x68] sm:$0xff]
    %v999 = vld [vmem:[#allocation16 + $0x70] sm:$0xff]
    %v1000 = vld [vmem:[#allocation16 + $0x78] sm:$0xff]
    %v1001 = vld [vmem:[#allocation18] sm:$0xff]
    %v1002 = vld [vmem:[#allocation18 + $0x8] sm:$0xff]
    %v1003 = vld [vmem:[#allocation18 + $0x10] sm:$0xff]
    %v1004 = vld [vmem:[#allocation18 + $0x18] sm:$0xff]
    %v1005 = vld [vmem:[#allocation18 + $0x20] sm:$0xff]
    %v1006 = vld [vmem:[#allocation18 + $0x28] sm:$0xff]
    %v1007 = vld [vmem:[#allocation18 + $0x30] sm:$0xff]
    %v1008 = vld [vmem:[#allocation18 + $0x38] sm:$0xff]
    %v1009 = vld [vmem:[#allocation18 + $0x40] sm:$0xff]
    %v1010 = vld [vmem:[#allocation18 + $0x48] sm:$0xff]
    %v1011 = vld [vmem:[#allocation18 + $0x50] sm:$0xff]
    %v1012 = vld [vmem:[#allocation18 + $0x58] sm:$0xff]
    %v1013 = vld [vmem:[#allocation18 + $0x60] sm:$0xff]
    %v1014 = vld [vmem:[#allocation18 + $0x68] sm:$0xff]
    %v1015 = vld [vmem:[#allocation18 + $0x70] sm:$0xff]
    %v1016 = vld [vmem:[#allocation18 + $0x78] sm:$0xff]
    %v1017 = vld [vmem:[#allocation19] sm:$0xff]
    %v1018 = vld [vmem:[#allocation19 + $0x8] sm:$0xff]
    %v1019 = vld [vmem:[#allocation19 + $0x10] sm:$0xff]
    %v1020 = vld [vmem:[#allocation19 + $0x18] sm:$0xff]
    %v1021 = vld [vmem:[#allocation19 + $0x20] sm:$0xff]
    %v1022 = vld [vmem:[#allocation19 + $0x28] sm:$0xff]
    %v1023 = vld [vmem:[#allocation19 + $0x30] sm:$0xff]
    %v1024 = vld [vmem:[#allocation19 + $0x38] sm:$0xff]
    %v1025 = vld [vmem:[#allocation19 + $0x40] sm:$0xff]
    %v1026 = vld [vmem:[#allocation19 + $0x48] sm:$0xff]
    %v1027 = vld [vmem:[#allocation19 + $0x50] sm:$0xff]
    %v1028 = vld [vmem:[#allocation19 + $0x58] sm:$0xff]
    %v1029 = vld [vmem:[#allocation19 + $0x60] sm:$0xff]
    %v1030 = vld [vmem:[#allocation19 + $0x68] sm:$0xff]
    %v1031 = vld [vmem:[#allocation19 + $0x70] sm:$0xff]
    %v1032 = vld [vmem:[#allocation19 + $0x78] sm:$0xff]
    %1033 = vmatprep.subr.mxu0 0.0
    %1034 = vmatpush1.msra.mxu0 %v1016
    %1035 = vmatprep.subr.mxu0 0.0
    %1036 = vmatpush1.msra.mxu0 %v1015
    %1037 = vmatprep.subr.mxu0 0.0
    %1038 = vmatpush1.msra.mxu0 %v1014
    %1039 = vmatprep.subr.mxu0 0.0
    %1040 = vmatpush1.msra.mxu0 %v1013
    %1041 = vmatprep.subr.mxu0 0.0
    %1042 = vmatpush1.msra.mxu0 %v1012
    %1043 = vmatprep.subr.mxu0 0.0
    %1044 = vmatpush1.msra.mxu0 %v1011
    %1045 = vmatprep.subr.mxu0 0.0
    %1046 = vmatpush1.msra.mxu0 %v1010
    %1047 = vmatprep.subr.mxu0 0.0
    %1048 = vmatpush1.msra.mxu0 %v1009
    %1049 = vmatprep.subr.mxu0 0.0
    %1050 = vmatpush1.msra.mxu0 %v1008
    %1051 = vmatprep.subr.mxu0 0.0
    %1052 = vmatpush1.msra.mxu0 %v1007
    %1053 = vmatprep.subr.mxu0 0.0
    %1054 = vmatpush1.msra.mxu0 %v1006
    %1055 = vmatprep.subr.mxu0 0.0
    %1056 = vmatpush1.msra.mxu0 %v1005
    %1057 = vmatprep.subr.mxu0 0.0
    %1058 = vmatpush1.msra.mxu0 %v1004
    %1059 = vmatprep.subr.mxu0 0.0
    %1060 = vmatpush1.msra.mxu0 %v1003
    %1061 = vmatprep.subr.mxu0 0.0
    %1062 = vmatpush1.msra.mxu0 %v1002
    %1063 = vmatprep.subr.mxu0 0.0
    %1064 = vmatpush1.msra.mxu0 %v1001
    %1065 = vmatprep.subr.mxu0 0.0
    %1066 = vmatpush2.msra.mxu0 0.0
    %1067 = vmatprep.subr.mxu0 0.0
    %1068 = vmatpush2.msra.mxu0 0.0
    %1069 = vmatprep.subr.mxu0 0.0
    %1070 = vmatpush2.msra.mxu0 0.0
    %1071 = vmatprep.subr.mxu0 0.0
    %1072 = vmatpush2.msra.mxu0 0.0
    %1073 = vmatprep.subr.mxu0 0.0
    %1074 = vmatpush2.msra.mxu0 0.0
    %1075 = vmatprep.subr.mxu0 0.0
    %1076 = vmatpush2.msra.mxu0 0.0
    %1077 = vmatprep.subr.mxu0 0.0
    %1078 = vmatpush2.msra.mxu0 0.0
    %1079 = vmatprep.subr.mxu0 0.0
    %1080 = vmatpush2.msra.mxu0 0.0
    %1081 = vmatprep.subr.mxu0 0.0
    %1082 = vmatpush2.msra.mxu0 0.0
    %1083 = vmatprep.subr.mxu0 0.0
    %1084 = vmatpush2.msra.mxu0 0.0
    %1085 = vmatprep.subr.mxu0 0.0
    %1086 = vmatpush2.msra.mxu0 0.0
    %1087 = vmatprep.subr.mxu0 0.0
    %1088 = vmatpush2.msra.mxu0 0.0
    %1089 = vmatprep.subr.mxu0 0.0
    %1090 = vmatpush2.msra.mxu0 0.0
    %1091 = vmatprep.subr.mxu0 0.0
    %1092 = vmatpush2.msra.mxu0 0.0
    %1093 = vmatprep.subr.mxu0 0.0
    %1094 = vmatpush2.msra.mxu0 0.0
    %1095 = vmatprep.subr.mxu0 0.0
    %1096 = vmatpush2.msra.mxu0 0.0
    %1097 = vmatprep.mubr.f32.mxu0 0.0
    %1098 = vmatmul.mubr.f32.gmra.mxu0 %v800
    %v1099 = vpop.f32.mrf.mxu0
    %v1100 = vadd.f32 0.0, %v1099
    %v1101 = vpop.f32.mrf.mxu0
    %1102 = vdwg.mxu0
    %1103 = vmatprep.subr.mxu0 0.0
    %1104 = vmatpush1.msra.mxu0 %v1000
    %1105 = vmatprep.subr.mxu0 0.0
    %1106 = vmatpush1.msra.mxu0 %v999
    %1107 = vmatprep.subr.mxu0 0.0
    %1108 = vmatpush1.msra.mxu0 %v998
    %1109 = vmatprep.subr.mxu0 0.0
    %1110 = vmatpush1.msra.mxu0 %v997
    %1111 = vmatprep.subr.mxu0 0.0
    %1112 = vmatpush1.msra.mxu0 %v996
    %1113 = vmatprep.subr.mxu0 0.0
    %1114 = vmatpush1.msra.mxu0 %v995
    %1115 = vmatprep.subr.mxu0 0.0
    %1116 = vmatpush1.msra.mxu0 %v994
    %1117 = vmatprep.subr.mxu0 0.0
    %1118 = vmatpush1.msra.mxu0 %v993
    %1119 = vmatprep.subr.mxu0 0.0
    %1120 = vmatpush1.msra.mxu0 %v992
    %1121 = vmatprep.subr.mxu0 0.0
    %1122 = vmatpush1.msra.mxu0 %v991
    %1123 = vmatprep.subr.mxu0 0.0
    %1124 = vmatpush1.msra.mxu0 %v990
    %1125 = vmatprep.subr.mxu0 0.0
    %1126 = vmatpush1.msra.mxu0 %v989
    %1127 = vmatprep.subr.mxu0 0.0
    %1128 = vmatpush1.msra.mxu0 %v988
    %1129 = vmatprep.subr.mxu0 0.0
    %1130 = vmatpush1.msra.mxu0 %v987
    %1131 = vmatprep.subr.mxu0 0.0
    %1132 = vmatpush1.msra.mxu0 %v986
    %1133 = vmatprep.subr.mxu0 0.0
    %1134 = vmatpush1.msra.mxu0 %v985
    %1135 = vmatprep.subr.mxu0 0.0
    %1136 = vmatpush2.msra.mxu0 0.0
    %1137 = vmatprep.subr.mxu0 0.0
    %1138 = vmatpush2.msra.mxu0 0.0
    %1139 = vmatprep.subr.mxu0 0.0
    %1140 = vmatpush2.msra.mxu0 0.0
    %1141 = vmatprep.subr.mxu0 0.0
    %1142 = vmatpush2.msra.mxu0 0.0
    %1143 = vmatprep.subr.mxu0 0.0
    %1144 = vmatpush2.msra.mxu0 0.0
    %1145 = vmatprep.subr.mxu0 0.0
    %1146 = vmatpush2.msra.mxu0 0.0
    %1147 = vmatprep.subr.mxu0 0.0
    %1148 = vmatpush2.msra.mxu0 0.0
    %1149 = vmatprep.subr.mxu0 0.0
    %1150 = vmatpush2.msra.mxu0 0.0
    %1151 = vmatprep.subr.mxu0 0.0
    %1152 = vmatpush2.msra.mxu0 0.0
    %1153 = vmatprep.subr.mxu0 0.0
    %1154 = vmatpush2.msra.mxu0 0.0
    %1155 = vmatprep.subr.mxu0 0.0
    %1156 = vmatpush2.msra.mxu0 0.0
    %1157 = vmatprep.subr.mxu0 0.0
    %1158 = vmatpush2.msra.mxu0 0.0
    %1159 = vmatprep.subr.mxu0 0.0
    %1160 = vmatpush2.msra.mxu0 0.0
    %1161 = vmatprep.subr.mxu0 0.0
    %1162 = vmatpush2.msra.mxu0 0.0
    %1163 = vmatprep.subr.mxu0 0.0
    %1164 = vmatpush2.msra.mxu0 0.0
    %1165 = vmatprep.subr.mxu0 0.0
    %1166 = vmatpush2.msra.mxu0 0.0
    %1167 = vmatprep.mubr.f32.mxu0 0.0
    %1168 = vmatmul.mubr.f32.gmra.mxu0 %v616
    %v1169 = vpop.f32.mrf.mxu0
    %v1170 = vadd.f32 %v1100, %v1169
    %v1171 = vpop.f32.mrf.mxu0
    %1172 = vdwg.mxu0
    %1173 = vmatprep.subr.mxu0 0.0
    %1174 = vmatpush1.msra.mxu0 %v1032
    %1175 = vmatprep.subr.mxu0 0.0
    %1176 = vmatpush1.msra.mxu0 %v1031
    %1177 = vmatprep.subr.mxu0 0.0
    %1178 = vmatpush1.msra.mxu0 %v1030
    %1179 = vmatprep.subr.mxu0 0.0
    %1180 = vmatpush1.msra.mxu0 %v1029
    %1181 = vmatprep.subr.mxu0 0.0
    %1182 = vmatpush1.msra.mxu0 %v1028
    %1183 = vmatprep.subr.mxu0 0.0
    %1184 = vmatpush1.msra.mxu0 %v1027
    %1185 = vmatprep.subr.mxu0 0.0
    %1186 = vmatpush1.msra.mxu0 %v1026
    %1187 = vmatprep.subr.mxu0 0.0
    %1188 = vmatpush1.msra.mxu0 %v1025
    %1189 = vmatprep.subr.mxu0 0.0
    %1190 = vmatpush1.msra.mxu0 %v1024
    %1191 = vmatprep.subr.mxu0 0.0
    %1192 = vmatpush1.msra.mxu0 %v1023
    %1193 = vmatprep.subr.mxu0 0.0
    %1194 = vmatpush1.msra.mxu0 %v1022
    %1195 = vmatprep.subr.mxu0 0.0
    %1196 = vmatpush1.msra.mxu0 %v1021
    %1197 = vmatprep.subr.mxu0 0.0
    %1198 = vmatpush1.msra.mxu0 %v1020
    %1199 = vmatprep.subr.mxu0 0.0
    %1200 = vmatpush1.msra.mxu0 %v1019
    %1201 = vmatprep.subr.mxu0 0.0
    %1202 = vmatpush1.msra.mxu0 %v1018
    %1203 = vmatprep.subr.mxu0 0.0
    %1204 = vmatpush1.msra.mxu0 %v1017
    %1205 = vmatprep.subr.mxu0 0.0
    %1206 = vmatpush2.msra.mxu0 0.0
    %1207 = vmatprep.subr.mxu0 0.0
    %1208 = vmatpush2.msra.mxu0 0.0
    %1209 = vmatprep.subr.mxu0 0.0
    %1210 = vmatpush2.msra.mxu0 0.0
    %1211 = vmatprep.subr.mxu0 0.0
    %1212 = vmatpush2.msra.mxu0 0.0
    %1213 = vmatprep.subr.mxu0 0.0
    %1214 = vmatpush2.msra.mxu0 0.0
    %1215 = vmatprep.subr.mxu0 0.0
    %1216 = vmatpush2.msra.mxu0 0.0
    %1217 = vmatprep.subr.mxu0 0.0
    %1218 = vmatpush2.msra.mxu0 0.0
    %1219 = vmatprep.subr.mxu0 0.0
    %1220 = vmatpush2.msra.mxu0 0.0
    %1221 = vmatprep.subr.mxu0 0.0
    %1222 = vmatpush2.msra.mxu0 0.0
    %1223 = vmatprep.subr.mxu0 0.0
    %1224 = vmatpush2.msra.mxu0 0.0
    %1225 = vmatprep.subr.mxu0 0.0
    %1226 = vmatpush2.msra.mxu0 0.0
    %1227 = vmatprep.subr.mxu0 0.0
    %1228 = vmatpush2.msra.mxu0 0.0
    %1229 = vmatprep.subr.mxu0 0.0
    %1230 = vmatpush2.msra.mxu0 0.0
    %1231 = vmatprep.subr.mxu0 0.0
    %1232 = vmatpush2.msra.mxu0 0.0
    %1233 = vmatprep.subr.mxu0 0.0
    %1234 = vmatpush2.msra.mxu0 0.0
    %1235 = vmatprep.subr.mxu0 0.0
    %1236 = vmatpush2.msra.mxu0 0.0
    %1237 = vmatprep.mubr.f32.mxu0 0.0
    %1238 = vmatmul.mubr.f32.gmra.mxu0 %v984
    %v1239 = vpop.f32.mrf.mxu0
    %v1240 = vadd.f32 0.0, %v1239
    %v1241 = vpop.f32.mrf.mxu0
    %1242 = vdwg.mxu0
    %v1243 = vadd.f32 %v1170, %v1240
    %v1244 = vld [vmem:[%s37] sm:$0x1]
    %v1246 = vlaneseq
    %v1247 = vshrl.u32 %v1246, 7
    %v1248 = vsub.s32 0, %v1247
    %v1249 = vrot.slane %v1244, %v1248
    %v1251 = vadd.f32 %v1243, %v1249
    %v1252 = vtanh.pop %v1251
    %v1253 = vld [vmem:[#allocation21] sm:$0xff]
    %v1254 = vld [vmem:[#allocation21 + $0x8] sm:$0xff]
    %v1255 = vld [vmem:[#allocation21 + $0x10] sm:$0xff]
    %v1256 = vld [vmem:[#allocation21 + $0x18] sm:$0xff]
    %v1257 = vld [vmem:[#allocation21 + $0x20] sm:$0xff]
    %v1258 = vld [vmem:[#allocation21 + $0x28] sm:$0xff]
    %v1259 = vld [vmem:[#allocation21 + $0x30] sm:$0xff]
    %v1260 = vld [vmem:[#allocation21 + $0x38] sm:$0xff]
    %v1261 = vld [vmem:[#allocation21 + $0x40] sm:$0xff]
    %v1262 = vld [vmem:[#allocation21 + $0x48] sm:$0xff]
    %v1263 = vld [vmem:[#allocation21 + $0x50] sm:$0xff]
    %v1264 = vld [vmem:[#allocation21 + $0x58] sm:$0xff]
    %v1265 = vld [vmem:[#allocation21 + $0x60] sm:$0xff]
    %v1266 = vld [vmem:[#allocation21 + $0x68] sm:$0xff]
    %v1267 = vld [vmem:[#allocation21 + $0x70] sm:$0xff]
    %v1268 = vld [vmem:[#allocation21 + $0x78] sm:$0xff]
    %v1269 = vld [vmem:[%s41] sm:$0x1]
    %v1271 = vlaneseq
    %v1272 = vshrl.u32 %v1271, 7
    %v1273 = vsub.s32 0, %v1272
    %v1274 = vrot.slane %v1269, %v1273
    %1276 = vmatprep.subr.mxu0 0.0
    %1277 = vmatpush1.msra.mxu0 %v1268
    %1278 = vmatprep.subr.mxu0 0.0
    %1279 = vmatpush1.msra.mxu0 %v1267
    %1280 = vmatprep.subr.mxu0 0.0
    %1281 = vmatpush1.msra.mxu0 %v1266
    %1282 = vmatprep.subr.mxu0 0.0
    %1283 = vmatpush1.msra.mxu0 %v1265
    %1284 = vmatprep.subr.mxu0 0.0
    %1285 = vmatpush1.msra.mxu0 %v1264
    %1286 = vmatprep.subr.mxu0 0.0
    %1287 = vmatpush1.msra.mxu0 %v1263
    %1288 = vmatprep.subr.mxu0 0.0
    %1289 = vmatpush1.msra.mxu0 %v1262
    %1290 = vmatprep.subr.mxu0 0.0
    %1291 = vmatpush1.msra.mxu0 %v1261
    %1292 = vmatprep.subr.mxu0 0.0
    %1293 = vmatpush1.msra.mxu0 %v1260
    %1294 = vmatprep.subr.mxu0 0.0
    %1295 = vmatpush1.msra.mxu0 %v1259
    %1296 = vmatprep.subr.mxu0 0.0
    %1297 = vmatpush1.msra.mxu0 %v1258
    %1298 = vmatprep.subr.mxu0 0.0
    %1299 = vmatpush1.msra.mxu0 %v1257
    %1300 = vmatprep.subr.mxu0 0.0
    %1301 = vmatpush1.msra.mxu0 %v1256
    %1302 = vmatprep.subr.mxu0 0.0
    %1303 = vmatpush1.msra.mxu0 %v1255
    %1304 = vmatprep.subr.mxu0 0.0
    %1305 = vmatpush1.msra.mxu0 %v1254
    %1306 = vmatprep.subr.mxu0 0.0
    %1307 = vmatpush1.msra.mxu0 %v1253
    %1308 = vmatprep.subr.mxu0 0.0
    %1309 = vmatpush2.msra.mxu0 0.0
    %1310 = vmatprep.subr.mxu0 0.0
    %1311 = vmatpush2.msra.mxu0 0.0
    %1312 = vmatprep.subr.mxu0 0.0
    %1313 = vmatpush2.msra.mxu0 0.0
    %1314 = vmatprep.subr.mxu0 0.0
    %1315 = vmatpush2.msra.mxu0 0.0
    %1316 = vmatprep.subr.mxu0 0.0
    %1317 = vmatpush2.msra.mxu0 0.0
    %1318 = vmatprep.subr.mxu0 0.0
    %1319 = vmatpush2.msra.mxu0 0.0
    %1320 = vmatprep.subr.mxu0 0.0
    %1321 = vmatpush2.msra.mxu0 0.0
    %1322 = vmatprep.subr.mxu0 0.0
    %1323 = vmatpush2.msra.mxu0 0.0
    %1324 = vmatprep.subr.mxu0 0.0
    %1325 = vmatpush2.msra.mxu0 0.0
    %1326 = vmatprep.subr.mxu0 0.0
    %1327 = vmatpush2.msra.mxu0 0.0
    %1328 = vmatprep.subr.mxu0 0.0
    %1329 = vmatpush2.msra.mxu0 0.0
    %1330 = vmatprep.subr.mxu0 0.0
    %1331 = vmatpush2.msra.mxu0 0.0
    %1332 = vmatprep.subr.mxu0 0.0
    %1333 = vmatpush2.msra.mxu0 0.0
    %1334 = vmatprep.subr.mxu0 0.0
    %1335 = vmatpush2.msra.mxu0 0.0
    %1336 = vmatprep.subr.mxu0 0.0
    %1337 = vmatpush2.msra.mxu0 0.0
    %1338 = vmatprep.subr.mxu0 0.0
    %1339 = vmatpush2.msra.mxu0 0.0
    %1340 = vmatprep.mubr.f32.mxu0 0.0
    %1341 = vmatmul.mubr.f32.gmra.mxu0 %v1252
    %v1342 = vpop.f32.mrf.mxu0
    %v1343 = vadd.f32 %v1274, %v1342
    %v1344 = vpop.f32.mrf.mxu0
    %1345 = vdwg.mxu0
    %v1346 = vtanh.pop %v1343
    %v1347 = vld [vmem:[#allocation22] sm:$0xff]
    %v1348 = vld [vmem:[#allocation22 + $0x8] sm:$0xff]
    %v1349 = vld [vmem:[#allocation22 + $0x10] sm:$0xff]
    %v1350 = vld [vmem:[#allocation22 + $0x18] sm:$0xff]
    %v1351 = vld [vmem:[#allocation22 + $0x20] sm:$0xff]
    %v1352 = vld [vmem:[#allocation22 + $0x28] sm:$0xff]
    %v1353 = vld [vmem:[#allocation22 + $0x30] sm:$0xff]
    %v1354 = vld [vmem:[#allocation22 + $0x38] sm:$0xff]
    %v1355 = vld [vmem:[#allocation22 + $0x40] sm:$0xff]
    %v1356 = vld [vmem:[#allocation22 + $0x48] sm:$0xff]
    %v1357 = vld [vmem:[#allocation22 + $0x50] sm:$0xff]
    %v1358 = vld [vmem:[#allocation22 + $0x58] sm:$0xff]
    %v1359 = vld [vmem:[#allocation22 + $0x60] sm:$0xff]
    %v1360 = vld [vmem:[#allocation22 + $0x68] sm:$0xff]
    %v1361 = vld [vmem:[#allocation22 + $0x70] sm:$0xff]
    %v1362 = vld [vmem:[#allocation22 + $0x78] sm:$0xff]
    %v1363 = vld [vmem:[%s45] sm:$0x1]
    %v1365 = vlaneseq
    %v1366 = vshrl.u32 %v1365, 7
    %v1367 = vsub.s32 0, %v1366
    %v1368 = vrot.slane %v1363, %v1367
    %1370 = vmatprep.subr.mxu0 0.0
    %1371 = vmatpush1.msra.mxu0 %v1362
    %1372 = vmatprep.subr.mxu0 0.0
    %1373 = vmatpush1.msra.mxu0 %v1361
    %1374 = vmatprep.subr.mxu0 0.0
    %1375 = vmatpush1.msra.mxu0 %v1360
    %1376 = vmatprep.subr.mxu0 0.0
    %1377 = vmatpush1.msra.mxu0 %v1359
    %1378 = vmatprep.subr.mxu0 0.0
    %1379 = vmatpush1.msra.mxu0 %v1358
    %1380 = vmatprep.subr.mxu0 0.0
    %1381 = vmatpush1.msra.mxu0 %v1357
    %1382 = vmatprep.subr.mxu0 0.0
    %1383 = vmatpush1.msra.mxu0 %v1356
    %1384 = vmatprep.subr.mxu0 0.0
    %1385 = vmatpush1.msra.mxu0 %v1355
    %1386 = vmatprep.subr.mxu0 0.0
    %1387 = vmatpush1.msra.mxu0 %v1354
    %1388 = vmatprep.subr.mxu0 0.0
    %1389 = vmatpush1.msra.mxu0 %v1353
    %1390 = vmatprep.subr.mxu0 0.0
    %1391 = vmatpush1.msra.mxu0 %v1352
    %1392 = vmatprep.subr.mxu0 0.0
    %1393 = vmatpush1.msra.mxu0 %v1351
    %1394 = vmatprep.subr.mxu0 0.0
    %1395 = vmatpush1.msra.mxu0 %v1350
    %1396 = vmatprep.subr.mxu0 0.0
    %1397 = vmatpush1.msra.mxu0 %v1349
    %1398 = vmatprep.subr.mxu0 0.0
    %1399 = vmatpush1.msra.mxu0 %v1348
    %1400 = vmatprep.subr.mxu0 0.0
    %1401 = vmatpush1.msra.mxu0 %v1347
    %1402 = vmatprep.subr.mxu0 0.0
    %1403 = vmatpush2.msra.mxu0 0.0
    %1404 = vmatprep.subr.mxu0 0.0
    %1405 = vmatpush2.msra.mxu0 0.0
    %1406 = vmatprep.subr.mxu0 0.0
    %1407 = vmatpush2.msra.mxu0 0.0
    %1408 = vmatprep.subr.mxu0 0.0
    %1409 = vmatpush2.msra.mxu0 0.0
    %1410 = vmatprep.subr.mxu0 0.0
    %1411 = vmatpush2.msra.mxu0 0.0
    %1412 = vmatprep.subr.mxu0 0.0
    %1413 = vmatpush2.msra.mxu0 0.0
    %1414 = vmatprep.subr.mxu0 0.0
    %1415 = vmatpush2.msra.mxu0 0.0
    %1416 = vmatprep.subr.mxu0 0.0
    %1417 = vmatpush2.msra.mxu0 0.0
    %1418 = vmatprep.subr.mxu0 0.0
    %1419 = vmatpush2.msra.mxu0 0.0
    %1420 = vmatprep.subr.mxu0 0.0
    %1421 = vmatpush2.msra.mxu0 0.0
    %1422 = vmatprep.subr.mxu0 0.0
    %1423 = vmatpush2.msra.mxu0 0.0
    %1424 = vmatprep.subr.mxu0 0.0
    %1425 = vmatpush2.msra.mxu0 0.0
    %1426 = vmatprep.subr.mxu0 0.0
    %1427 = vmatpush2.msra.mxu0 0.0
    %1428 = vmatprep.subr.mxu0 0.0
    %1429 = vmatpush2.msra.mxu0 0.0
    %1430 = vmatprep.subr.mxu0 0.0
    %1431 = vmatpush2.msra.mxu0 0.0
    %1432 = vmatprep.subr.mxu0 0.0
    %1433 = vmatpush2.msra.mxu0 0.0
    %1434 = vmatprep.mubr.f32.mxu0 0.0
    %1435 = vmatmul.mubr.f32.gmra.mxu0 %v1252
    %v1436 = vpop.f32.mrf.mxu0
    %v1437 = vadd.f32 %v1368, %v1436
    %v1438 = vpop.f32.mrf.mxu0
    %1439 = vdwg.mxu0
    %v1440 = vtanh.pop %v1437
    %v1441 = vld [vmem:[#allocation24] sm:$0xff]
    %v1442 = vld [vmem:[#allocation24 + $0x8] sm:$0xff]
    %v1443 = vld [vmem:[#allocation24 + $0x10] sm:$0xff]
    %v1444 = vld [vmem:[#allocation24 + $0x18] sm:$0xff]
    %v1445 = vld [vmem:[#allocation24 + $0x20] sm:$0xff]
    %v1446 = vld [vmem:[#allocation24 + $0x28] sm:$0xff]
    %v1447 = vld [vmem:[#allocation24 + $0x30] sm:$0xff]
    %v1448 = vld [vmem:[#allocation24 + $0x38] sm:$0xff]
    %v1449 = vld [vmem:[#allocation24 + $0x40] sm:$0xff]
    %v1450 = vld [vmem:[#allocation24 + $0x48] sm:$0xff]
    %v1451 = vld [vmem:[#allocation24 + $0x50] sm:$0xff]
    %v1452 = vld [vmem:[#allocation24 + $0x58] sm:$0xff]
    %v1453 = vld [vmem:[#allocation24 + $0x60] sm:$0xff]
    %v1454 = vld [vmem:[#allocation24 + $0x68] sm:$0xff]
    %v1455 = vld [vmem:[#allocation24 + $0x70] sm:$0xff]
    %v1456 = vld [vmem:[#allocation24 + $0x78] sm:$0xff]
    %v1457 = vld [vmem:[%s49] sm:$0x1]
    %v1459 = vlaneseq
    %v1460 = vshrl.u32 %v1459, 7
    %v1461 = vsub.s32 0, %v1460
    %v1462 = vrot.slane %v1457, %v1461
    %1464 = vmatprep.subr.mxu0 0.0
    %1465 = vmatpush1.msra.mxu0 %v1456
    %1466 = vmatprep.subr.mxu0 0.0
    %1467 = vmatpush1.msra.mxu0 %v1455
    %1468 = vmatprep.subr.mxu0 0.0
    %1469 = vmatpush1.msra.mxu0 %v1454
    %1470 = vmatprep.subr.mxu0 0.0
    %1471 = vmatpush1.msra.mxu0 %v1453
    %1472 = vmatprep.subr.mxu0 0.0
    %1473 = vmatpush1.msra.mxu0 %v1452
    %1474 = vmatprep.subr.mxu0 0.0
    %1475 = vmatpush1.msra.mxu0 %v1451
    %1476 = vmatprep.subr.mxu0 0.0
    %1477 = vmatpush1.msra.mxu0 %v1450
    %1478 = vmatprep.subr.mxu0 0.0
    %1479 = vmatpush1.msra.mxu0 %v1449
    %1480 = vmatprep.subr.mxu0 0.0
    %1481 = vmatpush1.msra.mxu0 %v1448
    %1482 = vmatprep.subr.mxu0 0.0
    %1483 = vmatpush1.msra.mxu0 %v1447
    %1484 = vmatprep.subr.mxu0 0.0
    %1485 = vmatpush1.msra.mxu0 %v1446
    %1486 = vmatprep.subr.mxu0 0.0
    %1487 = vmatpush1.msra.mxu0 %v1445
    %1488 = vmatprep.subr.mxu0 0.0
    %1489 = vmatpush1.msra.mxu0 %v1444
    %1490 = vmatprep.subr.mxu0 0.0
    %1491 = vmatpush1.msra.mxu0 %v1443
    %1492 = vmatprep.subr.mxu0 0.0
    %1493 = vmatpush1.msra.mxu0 %v1442
    %1494 = vmatprep.subr.mxu0 0.0
    %1495 = vmatpush1.msra.mxu0 %v1441
    %1496 = vmatprep.subr.mxu0 0.0
    %1497 = vmatpush2.msra.mxu0 0.0
    %1498 = vmatprep.subr.mxu0 0.0
    %1499 = vmatpush2.msra.mxu0 0.0
    %1500 = vmatprep.subr.mxu0 0.0
    %1501 = vmatpush2.msra.mxu0 0.0
    %1502 = vmatprep.subr.mxu0 0.0
    %1503 = vmatpush2.msra.mxu0 0.0
    %1504 = vmatprep.subr.mxu0 0.0
    %1505 = vmatpush2.msra.mxu0 0.0
    %1506 = vmatprep.subr.mxu0 0.0
    %1507 = vmatpush2.msra.mxu0 0.0
    %1508 = vmatprep.subr.mxu0 0.0
    %1509 = vmatpush2.msra.mxu0 0.0
    %1510 = vmatprep.subr.mxu0 0.0
    %1511 = vmatpush2.msra.mxu0 0.0
    %1512 = vmatprep.subr.mxu0 0.0
    %1513 = vmatpush2.msra.mxu0 0.0
    %1514 = vmatprep.subr.mxu0 0.0
    %1515 = vmatpush2.msra.mxu0 0.0
    %1516 = vmatprep.subr.mxu0 0.0
    %1517 = vmatpush2.msra.mxu0 0.0
    %1518 = vmatprep.subr.mxu0 0.0
    %1519 = vmatpush2.msra.mxu0 0.0
    %1520 = vmatprep.subr.mxu0 0.0
    %1521 = vmatpush2.msra.mxu0 0.0
    %1522 = vmatprep.subr.mxu0 0.0
    %1523 = vmatpush2.msra.mxu0 0.0
    %1524 = vmatprep.subr.mxu0 0.0
    %1525 = vmatpush2.msra.mxu0 0.0
    %1526 = vmatprep.subr.mxu0 0.0
    %1527 = vmatpush2.msra.mxu0 0.0
    %1528 = vmatprep.mubr.f32.mxu0 0.0
    %1529 = vmatmul.mubr.f32.gmra.mxu0 %v1252
    %v1530 = vpop.f32.mrf.mxu0
    %v1531 = vadd.f32 %v1462, %v1530
    %v1532 = vpop.f32.mrf.mxu0
    %1533 = vdwg.mxu0
    %v1534 = vtanh.pop %v1531
    %v1535 = vld [vmem:[#allocation25] sm:$0xff]
    %v1536 = vld [vmem:[#allocation25 + $0x8] sm:$0xff]
    %v1537 = vld [vmem:[#allocation25 + $0x10] sm:$0xff]
    %v1538 = vld [vmem:[#allocation25 + $0x18] sm:$0xff]
    %v1539 = vld [vmem:[#allocation25 + $0x20] sm:$0xff]
    %v1540 = vld [vmem:[#allocation25 + $0x28] sm:$0xff]
    %v1541 = vld [vmem:[#allocation25 + $0x30] sm:$0xff]
    %v1542 = vld [vmem:[#allocation25 + $0x38] sm:$0xff]
    %v1543 = vld [vmem:[#allocation25 + $0x40] sm:$0xff]
    %v1544 = vld [vmem:[#allocation25 + $0x48] sm:$0xff]
    %v1545 = vld [vmem:[#allocation25 + $0x50] sm:$0xff]
    %v1546 = vld [vmem:[#allocation25 + $0x58] sm:$0xff]
    %v1547 = vld [vmem:[#allocation25 + $0x60] sm:$0xff]
    %v1548 = vld [vmem:[#allocation25 + $0x68] sm:$0xff]
    %v1549 = vld [vmem:[#allocation25 + $0x70] sm:$0xff]
    %v1550 = vld [vmem:[#allocation25 + $0x78] sm:$0xff]
    %v1551 = vld [vmem:[%s53] sm:$0x1]
    %v1553 = vlaneseq
    %v1554 = vshrl.u32 %v1553, 7
    %v1555 = vsub.s32 0, %v1554
    %v1556 = vrot.slane %v1551, %v1555
    %1558 = vmatprep.subr.mxu0 0.0
    %1559 = vmatpush1.msra.mxu0 %v1550
    %1560 = vmatprep.subr.mxu0 0.0
    %1561 = vmatpush1.msra.mxu0 %v1549
    %1562 = vmatprep.subr.mxu0 0.0
    %1563 = vmatpush1.msra.mxu0 %v1548
    %1564 = vmatprep.subr.mxu0 0.0
    %1565 = vmatpush1.msra.mxu0 %v1547
    %1566 = vmatprep.subr.mxu0 0.0
    %1567 = vmatpush1.msra.mxu0 %v1546
    %1568 = vmatprep.subr.mxu0 0.0
    %1569 = vmatpush1.msra.mxu0 %v1545
    %1570 = vmatprep.subr.mxu0 0.0
    %1571 = vmatpush1.msra.mxu0 %v1544
    %1572 = vmatprep.subr.mxu0 0.0
    %1573 = vmatpush1.msra.mxu0 %v1543
    %1574 = vmatprep.subr.mxu0 0.0
    %1575 = vmatpush1.msra.mxu0 %v1542
    %1576 = vmatprep.subr.mxu0 0.0
    %1577 = vmatpush1.msra.mxu0 %v1541
    %1578 = vmatprep.subr.mxu0 0.0
    %1579 = vmatpush1.msra.mxu0 %v1540
    %1580 = vmatprep.subr.mxu0 0.0
    %1581 = vmatpush1.msra.mxu0 %v1539
    %1582 = vmatprep.subr.mxu0 0.0
    %1583 = vmatpush1.msra.mxu0 %v1538
    %1584 = vmatprep.subr.mxu0 0.0
    %1585 = vmatpush1.msra.mxu0 %v1537
    %1586 = vmatprep.subr.mxu0 0.0
    %1587 = vmatpush1.msra.mxu0 %v1536
    %1588 = vmatprep.subr.mxu0 0.0
    %1589 = vmatpush1.msra.mxu0 %v1535
    %1590 = vmatprep.subr.mxu0 0.0
    %1591 = vmatpush2.msra.mxu0 0.0
    %1592 = vmatprep.subr.mxu0 0.0
    %1593 = vmatpush2.msra.mxu0 0.0
    %1594 = vmatprep.subr.mxu0 0.0
    %1595 = vmatpush2.msra.mxu0 0.0
    %1596 = vmatprep.subr.mxu0 0.0
    %1597 = vmatpush2.msra.mxu0 0.0
    %1598 = vmatprep.subr.mxu0 0.0
    %1599 = vmatpush2.msra.mxu0 0.0
    %1600 = vmatprep.subr.mxu0 0.0
    %1601 = vmatpush2.msra.mxu0 0.0
    %1602 = vmatprep.subr.mxu0 0.0
    %1603 = vmatpush2.msra.mxu0 0.0
    %1604 = vmatprep.subr.mxu0 0.0
    %1605 = vmatpush2.msra.mxu0 0.0
    %1606 = vmatprep.subr.mxu0 0.0
    %1607 = vmatpush2.msra.mxu0 0.0
    %1608 = vmatprep.subr.mxu0 0.0
    %1609 = vmatpush2.msra.mxu0 0.0
    %1610 = vmatprep.subr.mxu0 0.0
    %1611 = vmatpush2.msra.mxu0 0.0
    %1612 = vmatprep.subr.mxu0 0.0
    %1613 = vmatpush2.msra.mxu0 0.0
    %1614 = vmatprep.subr.mxu0 0.0
    %1615 = vmatpush2.msra.mxu0 0.0
    %1616 = vmatprep.subr.mxu0 0.0
    %1617 = vmatpush2.msra.mxu0 0.0
    %1618 = vmatprep.subr.mxu0 0.0
    %1619 = vmatpush2.msra.mxu0 0.0
    %1620 = vmatprep.subr.mxu0 0.0
    %1621 = vmatpush2.msra.mxu0 0.0
    %1622 = vmatprep.mubr.f32.mxu0 0.0
    %1623 = vmatmul.mubr.f32.gmra.mxu0 %v1346
    %v1624 = vpop.f32.mrf.mxu0
    %v1625 = vadd.f32 %v1556, %v1624
    %v1626 = vpop.f32.mrf.mxu0
    %1627 = vdwg.mxu0
    %v1628 = vtanh.pop %v1625
    %v1629 = vld [vmem:[#allocation27] sm:$0xff]
    %v1630 = vld [vmem:[#allocation27 + $0x8] sm:$0xff]
    %v1631 = vld [vmem:[#allocation27 + $0x10] sm:$0xff]
    %v1632 = vld [vmem:[#allocation27 + $0x18] sm:$0xff]
    %v1633 = vld [vmem:[#allocation27 + $0x20] sm:$0xff]
    %v1634 = vld [vmem:[#allocation27 + $0x28] sm:$0xff]
    %v1635 = vld [vmem:[#allocation27 + $0x30] sm:$0xff]
    %v1636 = vld [vmem:[#allocation27 + $0x38] sm:$0xff]
    %v1637 = vld [vmem:[#allocation27 + $0x40] sm:$0xff]
    %v1638 = vld [vmem:[#allocation27 + $0x48] sm:$0xff]
    %v1639 = vld [vmem:[#allocation27 + $0x50] sm:$0xff]
    %v1640 = vld [vmem:[#allocation27 + $0x58] sm:$0xff]
    %v1641 = vld [vmem:[#allocation27 + $0x60] sm:$0xff]
    %v1642 = vld [vmem:[#allocation27 + $0x68] sm:$0xff]
    %v1643 = vld [vmem:[#allocation27 + $0x70] sm:$0xff]
    %v1644 = vld [vmem:[#allocation27 + $0x78] sm:$0xff]
    %v1645 = vld [vmem:[%s57] sm:$0x1]
    %v1647 = vlaneseq
    %v1648 = vshrl.u32 %v1647, 7
    %v1649 = vsub.s32 0, %v1648
    %v1650 = vrot.slane %v1645, %v1649
    %1652 = vmatprep.subr.mxu0 0.0
    %1653 = vmatpush1.msra.mxu0 %v1644
    %1654 = vmatprep.subr.mxu0 0.0
    %1655 = vmatpush1.msra.mxu0 %v1643
    %1656 = vmatprep.subr.mxu0 0.0
    %1657 = vmatpush1.msra.mxu0 %v1642
    %1658 = vmatprep.subr.mxu0 0.0
    %1659 = vmatpush1.msra.mxu0 %v1641
    %1660 = vmatprep.subr.mxu0 0.0
    %1661 = vmatpush1.msra.mxu0 %v1640
    %1662 = vmatprep.subr.mxu0 0.0
    %1663 = vmatpush1.msra.mxu0 %v1639
    %1664 = vmatprep.subr.mxu0 0.0
    %1665 = vmatpush1.msra.mxu0 %v1638
    %1666 = vmatprep.subr.mxu0 0.0
    %1667 = vmatpush1.msra.mxu0 %v1637
    %1668 = vmatprep.subr.mxu0 0.0
    %1669 = vmatpush1.msra.mxu0 %v1636
    %1670 = vmatprep.subr.mxu0 0.0
    %1671 = vmatpush1.msra.mxu0 %v1635
    %1672 = vmatprep.subr.mxu0 0.0
    %1673 = vmatpush1.msra.mxu0 %v1634
    %1674 = vmatprep.subr.mxu0 0.0
    %1675 = vmatpush1.msra.mxu0 %v1633
    %1676 = vmatprep.subr.mxu0 0.0
    %1677 = vmatpush1.msra.mxu0 %v1632
    %1678 = vmatprep.subr.mxu0 0.0
    %1679 = vmatpush1.msra.mxu0 %v1631
    %1680 = vmatprep.subr.mxu0 0.0
    %1681 = vmatpush1.msra.mxu0 %v1630
    %1682 = vmatprep.subr.mxu0 0.0
    %1683 = vmatpush1.msra.mxu0 %v1629
    %1684 = vmatprep.subr.mxu0 0.0
    %1685 = vmatpush2.msra.mxu0 0.0
    %1686 = vmatprep.subr.mxu0 0.0
    %1687 = vmatpush2.msra.mxu0 0.0
    %1688 = vmatprep.subr.mxu0 0.0
    %1689 = vmatpush2.msra.mxu0 0.0
    %1690 = vmatprep.subr.mxu0 0.0
    %1691 = vmatpush2.msra.mxu0 0.0
    %1692 = vmatprep.subr.mxu0 0.0
    %1693 = vmatpush2.msra.mxu0 0.0
    %1694 = vmatprep.subr.mxu0 0.0
    %1695 = vmatpush2.msra.mxu0 0.0
    %1696 = vmatprep.subr.mxu0 0.0
    %1697 = vmatpush2.msra.mxu0 0.0
    %1698 = vmatprep.subr.mxu0 0.0
    %1699 = vmatpush2.msra.mxu0 0.0
    %1700 = vmatprep.subr.mxu0 0.0
    %1701 = vmatpush2.msra.mxu0 0.0
    %1702 = vmatprep.subr.mxu0 0.0
    %1703 = vmatpush2.msra.mxu0 0.0
    %1704 = vmatprep.subr.mxu0 0.0
    %1705 = vmatpush2.msra.mxu0 0.0
    %1706 = vmatprep.subr.mxu0 0.0
    %1707 = vmatpush2.msra.mxu0 0.0
    %1708 = vmatprep.subr.mxu0 0.0
    %1709 = vmatpush2.msra.mxu0 0.0
    %1710 = vmatprep.subr.mxu0 0.0
    %1711 = vmatpush2.msra.mxu0 0.0
    %1712 = vmatprep.subr.mxu0 0.0
    %1713 = vmatpush2.msra.mxu0 0.0
    %1714 = vmatprep.subr.mxu0 0.0
    %1715 = vmatpush2.msra.mxu0 0.0
    %1716 = vmatprep.mubr.f32.mxu0 0.0
    %1717 = vmatmul.mubr.f32.gmra.mxu0 %v1628
    %v1718 = vpop.f32.mrf.mxu0
    %v1719 = vadd.f32 %v1650, %v1718
    %v1720 = vpop.f32.mrf.mxu0
    %1721 = vdwg.mxu0
    %v1722 = vtanh.pop %v1719
    %v1723 = vld [vmem:[#allocation28] sm:$0xff]
    %v1724 = vld [vmem:[#allocation28 + $0x8] sm:$0xff]
    %v1725 = vld [vmem:[#allocation28 + $0x10] sm:$0xff]
    %v1726 = vld [vmem:[#allocation28 + $0x18] sm:$0xff]
    %v1727 = vld [vmem:[#allocation28 + $0x20] sm:$0xff]
    %v1728 = vld [vmem:[#allocation28 + $0x28] sm:$0xff]
    %v1729 = vld [vmem:[#allocation28 + $0x30] sm:$0xff]
    %v1730 = vld [vmem:[#allocation28 + $0x38] sm:$0xff]
    %v1731 = vld [vmem:[#allocation28 + $0x40] sm:$0xff]
    %v1732 = vld [vmem:[#allocation28 + $0x48] sm:$0xff]
    %v1733 = vld [vmem:[#allocation28 + $0x50] sm:$0xff]
    %v1734 = vld [vmem:[#allocation28 + $0x58] sm:$0xff]
    %v1735 = vld [vmem:[#allocation28 + $0x60] sm:$0xff]
    %v1736 = vld [vmem:[#allocation28 + $0x68] sm:$0xff]
    %v1737 = vld [vmem:[#allocation28 + $0x70] sm:$0xff]
    %v1738 = vld [vmem:[#allocation28 + $0x78] sm:$0xff]
    %v1739 = vld [vmem:[%s61] sm:$0x1]
    %v1741 = vlaneseq
    %v1742 = vshrl.u32 %v1741, 7
    %v1743 = vsub.s32 0, %v1742
    %v1744 = vrot.slane %v1739, %v1743
    %1746 = vmatprep.subr.mxu0 0.0
    %1747 = vmatpush1.msra.mxu0 %v1738
    %1748 = vmatprep.subr.mxu0 0.0
    %1749 = vmatpush1.msra.mxu0 %v1737
    %1750 = vmatprep.subr.mxu0 0.0
    %1751 = vmatpush1.msra.mxu0 %v1736
    %1752 = vmatprep.subr.mxu0 0.0
    %1753 = vmatpush1.msra.mxu0 %v1735
    %1754 = vmatprep.subr.mxu0 0.0
    %1755 = vmatpush1.msra.mxu0 %v1734
    %1756 = vmatprep.subr.mxu0 0.0
    %1757 = vmatpush1.msra.mxu0 %v1733
    %1758 = vmatprep.subr.mxu0 0.0
    %1759 = vmatpush1.msra.mxu0 %v1732
    %1760 = vmatprep.subr.mxu0 0.0
    %1761 = vmatpush1.msra.mxu0 %v1731
    %1762 = vmatprep.subr.mxu0 0.0
    %1763 = vmatpush1.msra.mxu0 %v1730
    %1764 = vmatprep.subr.mxu0 0.0
    %1765 = vmatpush1.msra.mxu0 %v1729
    %1766 = vmatprep.subr.mxu0 0.0
    %1767 = vmatpush1.msra.mxu0 %v1728
    %1768 = vmatprep.subr.mxu0 0.0
    %1769 = vmatpush1.msra.mxu0 %v1727
    %1770 = vmatprep.subr.mxu0 0.0
    %1771 = vmatpush1.msra.mxu0 %v1726
    %1772 = vmatprep.subr.mxu0 0.0
    %1773 = vmatpush1.msra.mxu0 %v1725
    %1774 = vmatprep.subr.mxu0 0.0
    %1775 = vmatpush1.msra.mxu0 %v1724
    %1776 = vmatprep.subr.mxu0 0.0
    %1777 = vmatpush1.msra.mxu0 %v1723
    %1778 = vmatprep.subr.mxu0 0.0
    %1779 = vmatpush2.msra.mxu0 0.0
    %1780 = vmatprep.subr.mxu0 0.0
    %1781 = vmatpush2.msra.mxu0 0.0
    %1782 = vmatprep.subr.mxu0 0.0
    %1783 = vmatpush2.msra.mxu0 0.0
    %1784 = vmatprep.subr.mxu0 0.0
    %1785 = vmatpush2.msra.mxu0 0.0
    %1786 = vmatprep.subr.mxu0 0.0
    %1787 = vmatpush2.msra.mxu0 0.0
    %1788 = vmatprep.subr.mxu0 0.0
    %1789 = vmatpush2.msra.mxu0 0.0
    %1790 = vmatprep.subr.mxu0 0.0
    %1791 = vmatpush2.msra.mxu0 0.0
    %1792 = vmatprep.subr.mxu0 0.0
    %1793 = vmatpush2.msra.mxu0 0.0
    %1794 = vmatprep.subr.mxu0 0.0
    %1795 = vmatpush2.msra.mxu0 0.0
    %1796 = vmatprep.subr.mxu0 0.0
    %1797 = vmatpush2.msra.mxu0 0.0
    %1798 = vmatprep.subr.mxu0 0.0
    %1799 = vmatpush2.msra.mxu0 0.0
    %1800 = vmatprep.subr.mxu0 0.0
    %1801 = vmatpush2.msra.mxu0 0.0
    %1802 = vmatprep.subr.mxu0 0.0
    %1803 = vmatpush2.msra.mxu0 0.0
    %1804 = vmatprep.subr.mxu0 0.0
    %1805 = vmatpush2.msra.mxu0 0.0
    %1806 = vmatprep.subr.mxu0 0.0
    %1807 = vmatpush2.msra.mxu0 0.0
    %1808 = vmatprep.subr.mxu0 0.0
    %1809 = vmatpush2.msra.mxu0 0.0
    %1810 = vmatprep.mubr.f32.mxu0 0.0
    %1811 = vmatmul.mubr.f32.gmra.mxu0 %v1440
    %v1812 = vpop.f32.mrf.mxu0
    %v1813 = vadd.f32 %v1744, %v1812
    %v1814 = vpop.f32.mrf.mxu0
    %1815 = vdwg.mxu0
    %v1816 = vtanh.pop %v1813
    %v1817 = vld [vmem:[#allocation30] sm:$0xff]
    %v1818 = vld [vmem:[#allocation30 + $0x8] sm:$0xff]
    %v1819 = vld [vmem:[#allocation30 + $0x10] sm:$0xff]
    %v1820 = vld [vmem:[#allocation30 + $0x18] sm:$0xff]
    %v1821 = vld [vmem:[#allocation30 + $0x20] sm:$0xff]
    %v1822 = vld [vmem:[#allocation30 + $0x28] sm:$0xff]
    %v1823 = vld [vmem:[#allocation30 + $0x30] sm:$0xff]
    %v1824 = vld [vmem:[#allocation30 + $0x38] sm:$0xff]
    %v1825 = vld [vmem:[#allocation30 + $0x40] sm:$0xff]
    %v1826 = vld [vmem:[#allocation30 + $0x48] sm:$0xff]
    %v1827 = vld [vmem:[#allocation30 + $0x50] sm:$0xff]
    %v1828 = vld [vmem:[#allocation30 + $0x58] sm:$0xff]
    %v1829 = vld [vmem:[#allocation30 + $0x60] sm:$0xff]
    %v1830 = vld [vmem:[#allocation30 + $0x68] sm:$0xff]
    %v1831 = vld [vmem:[#allocation30 + $0x70] sm:$0xff]
    %v1832 = vld [vmem:[#allocation30 + $0x78] sm:$0xff]
    %v1833 = vld [vmem:[%s65] sm:$0x1]
    %v1835 = vlaneseq
    %v1836 = vshrl.u32 %v1835, 7
    %v1837 = vsub.s32 0, %v1836
    %v1838 = vrot.slane %v1833, %v1837
    %1840 = vmatprep.subr.mxu0 0.0
    %1841 = vmatpush1.msra.mxu0 %v1832
    %1842 = vmatprep.subr.mxu0 0.0
    %1843 = vmatpush1.msra.mxu0 %v1831
    %1844 = vmatprep.subr.mxu0 0.0
    %1845 = vmatpush1.msra.mxu0 %v1830
    %1846 = vmatprep.subr.mxu0 0.0
    %1847 = vmatpush1.msra.mxu0 %v1829
    %1848 = vmatprep.subr.mxu0 0.0
    %1849 = vmatpush1.msra.mxu0 %v1828
    %1850 = vmatprep.subr.mxu0 0.0
    %1851 = vmatpush1.msra.mxu0 %v1827
    %1852 = vmatprep.subr.mxu0 0.0
    %1853 = vmatpush1.msra.mxu0 %v1826
    %1854 = vmatprep.subr.mxu0 0.0
    %1855 = vmatpush1.msra.mxu0 %v1825
    %1856 = vmatprep.subr.mxu0 0.0
    %1857 = vmatpush1.msra.mxu0 %v1824
    %1858 = vmatprep.subr.mxu0 0.0
    %1859 = vmatpush1.msra.mxu0 %v1823
    %1860 = vmatprep.subr.mxu0 0.0
    %1861 = vmatpush1.msra.mxu0 %v1822
    %1862 = vmatprep.subr.mxu0 0.0
    %1863 = vmatpush1.msra.mxu0 %v1821
    %1864 = vmatprep.subr.mxu0 0.0
    %1865 = vmatpush1.msra.mxu0 %v1820
    %1866 = vmatprep.subr.mxu0 0.0
    %1867 = vmatpush1.msra.mxu0 %v1819
    %1868 = vmatprep.subr.mxu0 0.0
    %1869 = vmatpush1.msra.mxu0 %v1818
    %1870 = vmatprep.subr.mxu0 0.0
    %1871 = vmatpush1.msra.mxu0 %v1817
    %1872 = vmatprep.subr.mxu0 0.0
    %1873 = vmatpush2.msra.mxu0 0.0
    %1874 = vmatprep.subr.mxu0 0.0
    %1875 = vmatpush2.msra.mxu0 0.0
    %1876 = vmatprep.subr.mxu0 0.0
    %1877 = vmatpush2.msra.mxu0 0.0
    %1878 = vmatprep.subr.mxu0 0.0
    %1879 = vmatpush2.msra.mxu0 0.0
    %1880 = vmatprep.subr.mxu0 0.0
    %1881 = vmatpush2.msra.mxu0 0.0
    %1882 = vmatprep.subr.mxu0 0.0
    %1883 = vmatpush2.msra.mxu0 0.0
    %1884 = vmatprep.subr.mxu0 0.0
    %1885 = vmatpush2.msra.mxu0 0.0
    %1886 = vmatprep.subr.mxu0 0.0
    %1887 = vmatpush2.msra.mxu0 0.0
    %1888 = vmatprep.subr.mxu0 0.0
    %1889 = vmatpush2.msra.mxu0 0.0
    %1890 = vmatprep.subr.mxu0 0.0
    %1891 = vmatpush2.msra.mxu0 0.0
    %1892 = vmatprep.subr.mxu0 0.0
    %1893 = vmatpush2.msra.mxu0 0.0
    %1894 = vmatprep.subr.mxu0 0.0
    %1895 = vmatpush2.msra.mxu0 0.0
    %1896 = vmatprep.subr.mxu0 0.0
    %1897 = vmatpush2.msra.mxu0 0.0
    %1898 = vmatprep.subr.mxu0 0.0
    %1899 = vmatpush2.msra.mxu0 0.0
    %1900 = vmatprep.subr.mxu0 0.0
    %1901 = vmatpush2.msra.mxu0 0.0
    %1902 = vmatprep.subr.mxu0 0.0
    %1903 = vmatpush2.msra.mxu0 0.0
    %1904 = vmatprep.mubr.f32.mxu0 0.0
    %1905 = vmatmul.mubr.f32.gmra.mxu0 %v1816
    %v1906 = vpop.f32.mrf.mxu0
    %v1907 = vadd.f32 %v1838, %v1906
    %v1908 = vpop.f32.mrf.mxu0
    %1909 = vdwg.mxu0
    %v1910 = vtanh.pop %v1907
    %v1911 = vld [vmem:[#allocation31] sm:$0xff]
    %v1912 = vld [vmem:[#allocation31 + $0x8] sm:$0xff]
    %v1913 = vld [vmem:[#allocation31 + $0x10] sm:$0xff]
    %v1914 = vld [vmem:[#allocation31 + $0x18] sm:$0xff]
    %v1915 = vld [vmem:[#allocation31 + $0x20] sm:$0xff]
    %v1916 = vld [vmem:[#allocation31 + $0x28] sm:$0xff]
    %v1917 = vld [vmem:[#allocation31 + $0x30] sm:$0xff]
    %v1918 = vld [vmem:[#allocation31 + $0x38] sm:$0xff]
    %v1919 = vld [vmem:[#allocation31 + $0x40] sm:$0xff]
    %v1920 = vld [vmem:[#allocation31 + $0x48] sm:$0xff]
    %v1921 = vld [vmem:[#allocation31 + $0x50] sm:$0xff]
    %v1922 = vld [vmem:[#allocation31 + $0x58] sm:$0xff]
    %v1923 = vld [vmem:[#allocation31 + $0x60] sm:$0xff]
    %v1924 = vld [vmem:[#allocation31 + $0x68] sm:$0xff]
    %v1925 = vld [vmem:[#allocation31 + $0x70] sm:$0xff]
    %v1926 = vld [vmem:[#allocation31 + $0x78] sm:$0xff]
    %v1927 = vld [vmem:[%s69] sm:$0x1]
    %v1929 = vlaneseq
    %v1930 = vshrl.u32 %v1929, 7
    %v1931 = vsub.s32 0, %v1930
    %v1932 = vrot.slane %v1927, %v1931
    %1934 = vmatprep.subr.mxu0 0.0
    %1935 = vmatpush1.msra.mxu0 %v1926
    %1936 = vmatprep.subr.mxu0 0.0
    %1937 = vmatpush1.msra.mxu0 %v1925
    %1938 = vmatprep.subr.mxu0 0.0
    %1939 = vmatpush1.msra.mxu0 %v1924
    %1940 = vmatprep.subr.mxu0 0.0
    %1941 = vmatpush1.msra.mxu0 %v1923
    %1942 = vmatprep.subr.mxu0 0.0
    %1943 = vmatpush1.msra.mxu0 %v1922
    %1944 = vmatprep.subr.mxu0 0.0
    %1945 = vmatpush1.msra.mxu0 %v1921
    %1946 = vmatprep.subr.mxu0 0.0
    %1947 = vmatpush1.msra.mxu0 %v1920
    %1948 = vmatprep.subr.mxu0 0.0
    %1949 = vmatpush1.msra.mxu0 %v1919
    %1950 = vmatprep.subr.mxu0 0.0
    %1951 = vmatpush1.msra.mxu0 %v1918
    %1952 = vmatprep.subr.mxu0 0.0
    %1953 = vmatpush1.msra.mxu0 %v1917
    %1954 = vmatprep.subr.mxu0 0.0
    %1955 = vmatpush1.msra.mxu0 %v1916
    %1956 = vmatprep.subr.mxu0 0.0
    %1957 = vmatpush1.msra.mxu0 %v1915
    %1958 = vmatprep.subr.mxu0 0.0
    %1959 = vmatpush1.msra.mxu0 %v1914
    %1960 = vmatprep.subr.mxu0 0.0
    %1961 = vmatpush1.msra.mxu0 %v1913
    %1962 = vmatprep.subr.mxu0 0.0
    %1963 = vmatpush1.msra.mxu0 %v1912
    %1964 = vmatprep.subr.mxu0 0.0
    %1965 = vmatpush1.msra.mxu0 %v1911
    %1966 = vmatprep.subr.mxu0 0.0
    %1967 = vmatpush2.msra.mxu0 0.0
    %1968 = vmatprep.subr.mxu0 0.0
    %1969 = vmatpush2.msra.mxu0 0.0
    %1970 = vmatprep.subr.mxu0 0.0
    %1971 = vmatpush2.msra.mxu0 0.0
    %1972 = vmatprep.subr.mxu0 0.0
    %1973 = vmatpush2.msra.mxu0 0.0
    %1974 = vmatprep.subr.mxu0 0.0
    %1975 = vmatpush2.msra.mxu0 0.0
    %1976 = vmatprep.subr.mxu0 0.0
    %1977 = vmatpush2.msra.mxu0 0.0
    %1978 = vmatprep.subr.mxu0 0.0
    %1979 = vmatpush2.msra.mxu0 0.0
    %1980 = vmatprep.subr.mxu0 0.0
    %1981 = vmatpush2.msra.mxu0 0.0
    %1982 = vmatprep.subr.mxu0 0.0
    %1983 = vmatpush2.msra.mxu0 0.0
    %1984 = vmatprep.subr.mxu0 0.0
    %1985 = vmatpush2.msra.mxu0 0.0
    %1986 = vmatprep.subr.mxu0 0.0
    %1987 = vmatpush2.msra.mxu0 0.0
    %1988 = vmatprep.subr.mxu0 0.0
    %1989 = vmatpush2.msra.mxu0 0.0
    %1990 = vmatprep.subr.mxu0 0.0
    %1991 = vmatpush2.msra.mxu0 0.0
    %1992 = vmatprep.subr.mxu0 0.0
    %1993 = vmatpush2.msra.mxu0 0.0
    %1994 = vmatprep.subr.mxu0 0.0
    %1995 = vmatpush2.msra.mxu0 0.0
    %1996 = vmatprep.subr.mxu0 0.0
    %1997 = vmatpush2.msra.mxu0 0.0
    %1998 = vmatprep.mubr.f32.mxu0 0.0
    %1999 = vmatmul.mubr.f32.gmra.mxu0 %v1534
    %v2000 = vpop.f32.mrf.mxu0
    %v2001 = vadd.f32 %v1932, %v2000
    %v2002 = vpop.f32.mrf.mxu0
    %2003 = vdwg.mxu0
    %v2004 = vtanh.pop %v2001
    %v2005 = vld [vmem:[#allocation33] sm:$0xff]
    %v2006 = vld [vmem:[#allocation33 + $0x8] sm:$0xff]
    %v2007 = vld [vmem:[#allocation33 + $0x10] sm:$0xff]
    %v2008 = vld [vmem:[#allocation33 + $0x18] sm:$0xff]
    %v2009 = vld [vmem:[#allocation33 + $0x20] sm:$0xff]
    %v2010 = vld [vmem:[#allocation33 + $0x28] sm:$0xff]
    %v2011 = vld [vmem:[#allocation33 + $0x30] sm:$0xff]
    %v2012 = vld [vmem:[#allocation33 + $0x38] sm:$0xff]
    %v2013 = vld [vmem:[#allocation33 + $0x40] sm:$0xff]
    %v2014 = vld [vmem:[#allocation33 + $0x48] sm:$0xff]
    %v2015 = vld [vmem:[#allocation33 + $0x50] sm:$0xff]
    %v2016 = vld [vmem:[#allocation33 + $0x58] sm:$0xff]
    %v2017 = vld [vmem:[#allocation33 + $0x60] sm:$0xff]
    %v2018 = vld [vmem:[#allocation33 + $0x68] sm:$0xff]
    %v2019 = vld [vmem:[#allocation33 + $0x70] sm:$0xff]
    %v2020 = vld [vmem:[#allocation33 + $0x78] sm:$0xff]
    %v2021 = vld [vmem:[%s73] sm:$0x1]
    %v2023 = vlaneseq
    %v2024 = vshrl.u32 %v2023, 7
    %v2025 = vsub.s32 0, %v2024
    %v2026 = vrot.slane %v2021, %v2025
    %2028 = vmatprep.subr.mxu0 0.0
    %2029 = vmatpush1.msra.mxu0 %v2020
    %2030 = vmatprep.subr.mxu0 0.0
    %2031 = vmatpush1.msra.mxu0 %v2019
    %2032 = vmatprep.subr.mxu0 0.0
    %2033 = vmatpush1.msra.mxu0 %v2018
    %2034 = vmatprep.subr.mxu0 0.0
    %2035 = vmatpush1.msra.mxu0 %v2017
    %2036 = vmatprep.subr.mxu0 0.0
    %2037 = vmatpush1.msra.mxu0 %v2016
    %2038 = vmatprep.subr.mxu0 0.0
    %2039 = vmatpush1.msra.mxu0 %v2015
    %2040 = vmatprep.subr.mxu0 0.0
    %2041 = vmatpush1.msra.mxu0 %v2014
    %2042 = vmatprep.subr.mxu0 0.0
    %2043 = vmatpush1.msra.mxu0 %v2013
    %2044 = vmatprep.subr.mxu0 0.0
    %2045 = vmatpush1.msra.mxu0 %v2012
    %2046 = vmatprep.subr.mxu0 0.0
    %2047 = vmatpush1.msra.mxu0 %v2011
    %2048 = vmatprep.subr.mxu0 0.0
    %2049 = vmatpush1.msra.mxu0 %v2010
    %2050 = vmatprep.subr.mxu0 0.0
    %2051 = vmatpush1.msra.mxu0 %v2009
    %2052 = vmatprep.subr.mxu0 0.0
    %2053 = vmatpush1.msra.mxu0 %v2008
    %2054 = vmatprep.subr.mxu0 0.0
    %2055 = vmatpush1.msra.mxu0 %v2007
    %2056 = vmatprep.subr.mxu0 0.0
    %2057 = vmatpush1.msra.mxu0 %v2006
    %2058 = vmatprep.subr.mxu0 0.0
    %2059 = vmatpush1.msra.mxu0 %v2005
    %2060 = vmatprep.subr.mxu0 0.0
    %2061 = vmatpush2.msra.mxu0 0.0
    %2062 = vmatprep.subr.mxu0 0.0
    %2063 = vmatpush2.msra.mxu0 0.0
    %2064 = vmatprep.subr.mxu0 0.0
    %2065 = vmatpush2.msra.mxu0 0.0
    %2066 = vmatprep.subr.mxu0 0.0
    %2067 = vmatpush2.msra.mxu0 0.0
    %2068 = vmatprep.subr.mxu0 0.0
    %2069 = vmatpush2.msra.mxu0 0.0
    %2070 = vmatprep.subr.mxu0 0.0
    %2071 = vmatpush2.msra.mxu0 0.0
    %2072 = vmatprep.subr.mxu0 0.0
    %2073 = vmatpush2.msra.mxu0 0.0
    %2074 = vmatprep.subr.mxu0 0.0
    %2075 = vmatpush2.msra.mxu0 0.0
    %2076 = vmatprep.subr.mxu0 0.0
    %2077 = vmatpush2.msra.mxu0 0.0
    %2078 = vmatprep.subr.mxu0 0.0
    %2079 = vmatpush2.msra.mxu0 0.0
    %2080 = vmatprep.subr.mxu0 0.0
    %2081 = vmatpush2.msra.mxu0 0.0
    %2082 = vmatprep.subr.mxu0 0.0
    %2083 = vmatpush2.msra.mxu0 0.0
    %2084 = vmatprep.subr.mxu0 0.0
    %2085 = vmatpush2.msra.mxu0 0.0
    %2086 = vmatprep.subr.mxu0 0.0
    %2087 = vmatpush2.msra.mxu0 0.0
    %2088 = vmatprep.subr.mxu0 0.0
    %2089 = vmatpush2.msra.mxu0 0.0
    %2090 = vmatprep.subr.mxu0 0.0
    %2091 = vmatpush2.msra.mxu0 0.0
    %2092 = vmatprep.mubr.f32.mxu0 0.0
    %2093 = vmatmul.mubr.f32.gmra.mxu0 %v2004
    %v2094 = vpop.f32.mrf.mxu0
    %v2095 = vadd.f32 %v2026, %v2094
    %v2096 = vpop.f32.mrf.mxu0
    %2097 = vdwg.mxu0
    %v2098 = vtanh.pop %v2095
    %2099 = vst [vmem:[%s75] sm:$0xff] %v1722
    %2100 = vst [vmem:[%s75 + $0x8] sm:$0xff] %v1910
    %2101 = vst [vmem:[%s75 + $0x10] sm:$0xff] %v2098
    %2102 = vst [vmem:[%s75 + $0x18] sm:$0xff] %v1252
    // Predicated region
    $region234: #{autoencoder_forward.1} parent=1 // pred_check
      _
    $region235: #{autoencoder_forward.1} parent=1 // pred_check_branch
      %2104 = sbr.rel (0) target = $region237
    $region236: #{autoencoder_forward.1} parent=1 // pred_region
      _
    $region237: #{autoencoder_forward.1} parent=1 // pred_fallthru
      _
    // Predicated region
    $region238: #{autoencoder_forward.1} parent=1 // pred_check
      _
    $region239: #{autoencoder_forward.1} parent=1 // pred_check_branch
      %2106 = sbr.rel (0) target = $region241
    $region240: #{autoencoder_forward.1} parent=1 // pred_region
      _
    $region241: #{autoencoder_forward.1} parent=1 // pred_fallthru
      _
    %2107 = vsyncpa [#allocation3], 1
    %2108 = vsyncpa [#allocation5], 1
    %2109 = vsyncpa [#allocation8], 1
    %2110 = vsyncpa [#allocation11], 1
    %2111 = vsyncpa [#allocation14], 1
    %2112 = vsyncpa [#allocation17], 1
    %2113 = vsyncpa [#allocation20], 1
    %2114 = vsyncpa [#allocation23], 1
    %2115 = vsyncpa [#allocation26], 1
    %2116 = vsyncpa [#allocation29], 1
    %2117 = vsyncpa [#allocation32], 1

</llo_original>
